<compile_context>
chip_gen: v6e
topology: v6e:2x2x1
jax: 0.10.0
libtpu: 0.0.40
codegen_flags: <defaults>
</compile_context>

<pallas_src>
import functools

import jax
import jax.numpy as jnp
from jax.experimental import pallas as pl
from jax.experimental.pallas import tpu as pltpu

BN_EPS = 1e-5
_SUBLANE = 8        # channel-pad multiple (f32 sublane tile; use 16 for bf16-perfect tiles)
_N_SCAL_COLS = 6    # packed per-channel columns per block: g1, be1, b1, g2, be2, b_out


# ---------------------------------------------------------------------------
# pltpu.roll probe: use the XLU rotate if this jax/libtpu agrees on semantics,
# otherwise fall back to slice+concat (jnp.roll semantics).  Probed in bf16 since
# that is what the kernel rolls.
# TODO(synk): under AOT/mock compilation (no device) this silently falls back to the
# slower concat path; replace with a static capability/version check when available.
# ---------------------------------------------------------------------------
_PROBE_SHIFTS = (1, 15, 16, 240, 272, 496, 497, 511)


@functools.lru_cache(maxsize=1)
def _use_pltpu_roll() -> bool:
    try:
        x = jax.random.normal(jax.random.PRNGKey(1), (8, 512), jnp.float32)
        x = x.astype(jnp.bfloat16)

        def probe_kernel(x_ref, o_ref):
            for i, s in enumerate(_PROBE_SHIFTS):
                o_ref[i] = pltpu.roll(x_ref[...], s, 1)

        got = pl.pallas_call(
            probe_kernel,
            out_shape=jax.ShapeDtypeStruct((len(_PROBE_SHIFTS), 8, 512), jnp.bfloat16),
        )(x)
        want = jnp.stack([jnp.roll(x, s, axis=1) for s in _PROBE_SHIFTS])
        return bool(jnp.array_equal(got, want))
    except Exception:
        return False


# ---------------------------------------------------------------------------
# in-kernel helpers (all operate on (C, S) channels-first, S on the lane axis)
# ---------------------------------------------------------------------------
def _roll_lanes(x, shift, use_xlu_roll):
    """out[..., j] = x[..., (j - shift) % n]  (np.roll semantics, static shift)."""
    n = x.shape[-1]
    s = shift % n
    if s == 0:
        return x
    if use_xlu_roll:
        return pltpu.roll(x, s, 1)                       # XLU rotate (free slot)
    return jnp.concatenate([x[:, n - s:], x[:, :n - s]], axis=1)


def _seg_shift(x, d, seg, wrap_mask, use_xlu_roll):
    """Per-segment circular shift: y[r, b*seg+p] = x[r, b*seg+(p+d)%seg].

    wrap_mask is the precomputed boundary mask for (d, seg).  Fast path: when the
    segment spans the whole lane axis, a single whole-axis roll already wraps right.
    """
    if d == 0:
        return x
    main = _roll_lanes(x, -d, use_xlu_roll)
    if seg == x.shape[-1]:
        return main
    fix = _roll_lanes(x, (seg - d) if d > 0 else -(seg + d), use_xlu_roll)
    return jnp.where(wrap_mask, fix, main)


def _bn_relu(a, gamma, beta):
    """Training-mode BatchNorm2d (batch stats over N,H,W per channel) + ReLU.

    a: (C, S) f32;  gamma/beta: (C, 1) f32.  Single-pass stats (fine at these sizes;
    # TODO(synk): switch to two-pass/Welford at production sizes for safety).
    """
    inv_n = 1.0 / a.shape[-1]
    s1 = jnp.sum(a, axis=-1, keepdims=True)
    s2 = jnp.sum(a * a, axis=-1, keepdims=True)
    mean = s1 * inv_n
    var = s2 * inv_n - mean * mean                       # biased variance
    y = (a - mean) * jax.lax.rsqrt(var + BN_EPS) * gamma + beta
    return jnp.maximum(y, 0.0)


def _im2col_circ3x3(a, W, P, masks, use_xlu_roll):
    """im2col for a 3x3 circular conv: (Ci, S) bf16 -> (9*Ci, S) bf16, K=(ky,kx,ci)."""
    mx_neg, mx_pos, my_neg, my_pos = masks
    xm = _seg_shift(a, -1, W, mx_neg, use_xlu_roll)      # kx = 0
    xp = _seg_shift(a, +1, W, mx_pos, use_xlu_roll)      # kx = 2
    b3 = jnp.concatenate([xm, a, xp], axis=0)            # (3*Ci, S), kx-order 0,1,2
    ym = _seg_shift(b3, -W, P, my_neg, use_xlu_roll)     # ky = 0 (all 3 kx at once)
    yp = _seg_shift(b3, +W, P, my_pos, use_xlu_roll)     # ky = 2
    return jnp.concatenate([ym, b3, yp], axis=0)         # (9*Ci, S), ky outer


# ---------------------------------------------------------------------------
# fused ScaleBlock kernel (all PreResBlocks in one pallas_call)
# ---------------------------------------------------------------------------
def _scale_block_kernel(block_meta, H, W, use_xlu_roll, x_ref, scal_ref, *refs):
    o_ref = refs[-1]
    w_refs = refs[:-1]
    S = x_ref.shape[-1]
    P = H * W

    # hoisted circular-wrap masks, computed ONCE and reused by every conv/block
    lane = jax.lax.broadcasted_iota(jnp.int32, (1, S), 1)
    lx = lane % W
    mx_neg = lx < 1                      # dx = -1 wrap region
    mx_pos = lx >= (W - 1)               # dx = +1 wrap region
    if P == S:                           # single image: dy shift == whole-axis roll
        my_neg = my_pos = None
    else:
        lp = lane % P
        my_neg = lp < W                  # dy = -1 wrap region
        my_pos = lp >= (P - W)           # dy = +1 wrap region
    masks = (mx_neg, mx_pos, my_neg, my_pos)

    sc = scal_ref[...]                   # packed per-channel params, (C_max, 6*nblocks) f32
    a = x_ref[...].astype(jnp.float32)   # running activation, (C, S), VMEM resident

    for bi, (cin, medp, cout, skip) in enumerate(block_meta):
        w1 = w_refs[2 * bi][...]         # (medp, 9*cin)            bf16
        w2 = w_refs[2 * bi + 1][...]     # (cout, 9*medp [+ cin])   bf16, outconv(+skip) folded
        c0 = _N_SCAL_COLS * bi
        g1, be1 = sc[:cin, c0:c0 + 1], sc[:cin, c0 + 1:c0 + 2]
        b1 = sc[:medp, c0 + 2:c0 + 3]
        g2, be2 = sc[:medp, c0 + 3:c0 + 4], sc[:medp, c0 + 4:c0 + 5]
        bb = sc[:cout, c0 + 5:c0 + 6]

        x_in = a
        # conv1(ReLU(BN1(x)))  -- im2col built directly in bf16 (one cast)
        h = _bn_relu(x_in, g1, be1).astype(jnp.bfloat16)
        f = jnp.dot(w1, _im2col_circ3x3(h, W, P, masks, use_xlu_roll),
                    preferred_element_type=jnp.float32) + b1
        # conv2(ReLU(BN2(f))) with outconv folded into the weights
        h = _bn_relu(f, g2, be2).astype(jnp.bfloat16)
        cols = _im2col_circ3x3(h, W, P, masks, use_xlu_roll)
        if skip:
            # skipconv (1x1) merged into the same matmul along K
            cols = jnp.concatenate([cols, x_in.astype(jnp.bfloat16)], axis=0)
            a = jnp.dot(w2, cols, preferred_element_type=jnp.float32) + bb
        else:
            a = jnp.dot(w2, cols, preferred_element_type=jnp.float32) + bb + x_in

    o_ref[...] = a.astype(o_ref.dtype)   # lane-dense (C_out, S) store


# ---------------------------------------------------------------------------
# parameter preparation: fold outconv (+skipconv) into conv2, pad med channels,
# torch layouts -> kernel layouts
# ---------------------------------------------------------------------------
def _round_up(n, m):
    return -(-n // m) * m


def _prep_block(p):
    w1 = jnp.asarray(p["w1"], jnp.float32)            # (med, cin, 3, 3)
    w2 = jnp.asarray(p["w2"], jnp.float32)            # (med, med, 3, 3)
    wo = jnp.asarray(p["wo"], jnp.float32)            # (cout, med)
    med, cin = w1.shape[0], w1.shape[1]
    cout = wo.shape[0]
    medp = _round_up(med, _SUBLANE)
    pad = medp - med

    def kmat(w, co, ci):                               # (co, ci, 3, 3) -> (co, 9*ci), K=(ky,kx,ci)
        return jnp.transpose(w, (0, 2, 3, 1)).reshape(co, 9 * ci)

    # conv1: pad OUT channels to medp (zero rows -> exactly-zero padded activations)
    w1m = kmat(jnp.pad(w1, ((0, pad), (0, 0), (0, 0), (0, 0))), medp, cin)
    b1p = jnp.pad(jnp.asarray(p["b1"], jnp.float32), (0, pad))
    g2p = jnp.pad(jnp.asarray(p["g2"], jnp.float32), (0, pad))
    be2p = jnp.pad(jnp.asarray(p["be2"], jnp.float32), (0, pad))

    # conv2: pad IN channels to medp, fold the 1x1 outconv (and skipconv) in f32
    w2m = kmat(jnp.pad(w2, ((0, 0), (0, pad), (0, 0), (0, 0))), med, medp)   # (med, 9*medp)
    wf2 = wo @ w2m                                                            # (cout, 9*medp)
    bb = wo @ jnp.asarray(p["b2"], jnp.float32) + jnp.asarray(p["bo"], jnp.float32)
    skip = "ws" in p
    if skip:
        wf2 = jnp.concatenate([wf2, jnp.asarray(p["ws"], jnp.float32)], axis=1)
        bb = bb + jnp.asarray(p["bs"], jnp.float32)

    scalars = [jnp.asarray(p["g1"], jnp.float32), jnp.asarray(p["be1"], jnp.float32),
               b1p, g2p, be2p, bb]
    return dict(meta=(cin, medp, cout, skip),
                w1=w1m.astype(jnp.bfloat16), w2=wf2.astype(jnp.bfloat16),
                scalars=scalars)


# ---------------------------------------------------------------------------
# wrapper: PyTorch NCHW in/out, torch-layout parameters
# ---------------------------------------------------------------------------
def scale_block(x_nchw, torch_params):
    """ScaleBlock.forward.  x_nchw: (N, C, H, W) float32 (PyTorch layout)."""
    N, C, H, W = x_nchw.shape
    S = N * H * W
    prepared = [_prep_block(p) for p in torch_params]
    meta = tuple(pp["meta"] for pp in prepared)
    out_ch = meta[-1][2]

    # pack every per-channel vector into ONE f32 operand (cuts ~20 tiny DMA descriptors)
    cmax = max(max(m[0], m[1], m[2]) for m in meta)
    scal = jnp.zeros((cmax, _N_SCAL_COLS * len(meta)), jnp.float32)
    weights = []
    for bi, pp in enumerate(prepared):
        for j, v in enumerate(pp["scalars"]):
            scal = scal.at[: v.shape[0], _N_SCAL_COLS * bi + j].set(v)
        weights += [pp["w1"], pp["w2"]]

    x_cs = jnp.transpose(x_nchw, (1, 0, 2, 3)).reshape(C, S).astype(jnp.float32)
    args = [x_cs, scal] + weights

    # VMEM budget computed from the actual footprint (ports to production tiling /
    # v7x's 64 MiB) with a known-good floor at this size.
    io_bytes = sum(int(a.size) * a.dtype.itemsize for a in args) + out_ch * S * 4
    max_rows = max(9 * m[1] + m[0] + 4 * (m[0] + m[1] + m[2]) for m in meta)
    est = 2 * io_bytes + 4 * max_rows * S * 4
    vmem_limit = int(min(max(est, 32 * 1024 * 1024), 64 * 1024 * 1024))

    kernel = functools.partial(_scale_block_kernel, meta, H, W, _use_pltpu_roll())
    out = pl.pallas_call(
        kernel,
        out_shape=jax.ShapeDtypeStruct((out_ch, S), jnp.float32),
        in_specs=[pl.BlockSpec(memory_space=pltpu.MemorySpace.VMEM)] * len(args),
        out_specs=pl.BlockSpec(memory_space=pltpu.MemorySpace.VMEM),
        compiler_params=pltpu.CompilerParams(vmem_limit_bytes=vmem_limit),
    )(*args)
    return jnp.transpose(out.reshape(out_ch, N, H, W), (1, 0, 2, 3))


# ---------------------------------------------------------------------------
# pure-JAX f32 reference (NCHW, mirrors the PyTorch module exactly)
# ---------------------------------------------------------------------------
def _preres_ref(x, p):
    def bn_relu(v, g, b):
        m = jnp.mean(v, axis=(0, 2, 3), keepdims=True)
        var = jnp.mean((v - m) ** 2, axis=(0, 2, 3), keepdims=True)
        y = (v - m) * jax.lax.rsqrt(var + BN_EPS) * g.reshape(1, -1, 1, 1) \
            + b.reshape(1, -1, 1, 1)
        return jnp.maximum(y, 0.0)

    def conv3x3(v, w, b):
        vp = jnp.pad(v, ((0, 0), (0, 0), (1, 1), (1, 1)), mode="wrap")
        y = jax.lax.conv_general_dilated(
            vp, w, (1, 1), "VALID",
            dimension_numbers=("NCHW", "OIHW", "NCHW"),
            precision=jax.lax.Precision.HIGHEST)
        return y + b.reshape(1, -1, 1, 1)

    def conv1x1(v, w, b):
        y = jnp.einsum("oi,nihw->nohw", w, v, precision=jax.lax.Precision.HIGHEST)
        return y + b.reshape(1, -1, 1, 1)

    f = conv3x3(bn_relu(x, p["g1"], p["be1"]), p["w1"], p["b1"])
    f = conv3x3(bn_relu(f, p["g2"], p["be2"]), p["w2"], p["b2"])
    f = conv1x1(f, p["wo"], p["bo"])
    skip = conv1x1(x, p["ws"], p["bs"]) if "ws" in p else x
    return f + skip


def scale_block_ref(x, torch_params):
    f = x
    for p in torch_params:
        f = _preres_ref(f, p)
    return f


# ---------------------------------------------------------------------------
# deterministic parameter init (torch layout; shapes follow the module __init__)
# ---------------------------------------------------------------------------
def init_preres_params(key, in_ch, out_ch=None):
    med = in_ch // 2 if in_ch > 1 else 1
    o = in_ch if out_ch is None else out_ch
    ks = jax.random.split(key, 8)
    p = dict(
        g1=jnp.ones((in_ch,), jnp.float32),                 # BN defaults: gamma=1
        be1=jnp.zeros((in_ch,), jnp.float32),                # beta=0
        w1=0.1 * jax.random.normal(ks[0], (med, in_ch, 3, 3), jnp.float32),
        b1=0.01 * jax.random.normal(ks[1], (med,), jnp.float32),
        g2=jnp.ones((med,), jnp.float32),
        be2=jnp.zeros((med,), jnp.float32),
        w2=0.1 * jax.random.normal(ks[2], (med, med, 3, 3), jnp.float32),
        b2=0.01 * jax.random.normal(ks[3], (med,), jnp.float32),
        wo=0.1 * jax.random.normal(ks[4], (o, med), jnp.float32),
        bo=0.01 * jax.random.normal(ks[5], (o,), jnp.float32),
    )
    if out_ch is not None:
        p["ws"] = 0.1 * jax.random.normal(ks[6], (o, in_ch), jnp.float32)
        p["bs"] = 0.01 * jax.random.normal(ks[7], (o,), jnp.float32)
    return p


# ---------------------------------------------------------------------------
if __name__ == "__main__":
    key = jax.random.PRNGKey(0)
    kx, kb1, kb2 = jax.random.split(key, 3)

    # ScaleBlock(in_ch=8, out_ch=16, scale_depth=2) on a (2, 8, 16, 16) NCHW input.
    N, in_ch, H, W = 2, 8, 16, 16
    out_ch = 16
    x = jax.random.normal(kx, (N, in_ch, H, W), jnp.float32)

    params = [
        init_preres_params(kb1, in_ch, None),     # first_preres_blocks[0] (identity skip)
        init_preres_params(kb2, in_ch, out_ch),   # last_preres_block (1x1 skip conv)
    ]

    y = jax.block_until_ready(scale_block(x, params))
    assert y.shape == (N, out_ch, H, W)
    assert bool(jnp.all(jnp.isfinite(y)))

    # validate against the f32 reference (bf16 MXU operands => relaxed tolerance)
    y_ref = scale_block_ref(x, params)
    max_err = float(jnp.max(jnp.abs(y - y_ref)))
    assert bool(jnp.allclose(y, y_ref, atol=5e-2, rtol=5e-2)), max_err

    print("KERNEL_OK")
</pallas_src>

<mosaic_0001>
module attributes {stable_mosaic.version = 11 : i64} {
  func.func @probe_kernel(%arg0: memref<8x512xbf16, #tpu.memory_space<vmem>>, %arg1: memref<8x8x512xbf16, #tpu.memory_space<vmem>>) attributes {dimension_semantics = [], scalar_prefetch = 0 : i64, scratch_operands = 0 : i64, tpu.core_type = #tpu.core_type<tc>} {
    %c0 = arith.constant 0 : index
    %c0_0 = arith.constant 0 : index
    %0 = vector.load %arg0[%c0, %c0_0] : memref<8x512xbf16, #tpu.memory_space<vmem>>, vector<8x512xbf16>
    %c1_i32 = arith.constant 1 : i32
    %1 = tpu.dynamic_rotate %0 by %c1_i32 dim 1 : vector<8x512xbf16>, i32 -> vector<8x512xbf16>
    %c0_1 = arith.constant 0 : index
    %c0_2 = arith.constant 0 : index
    %c0_3 = arith.constant 0 : index
    %2 = vector.load %arg1[%c0_1, %c0_2, %c0_3] : memref<8x8x512xbf16, #tpu.memory_space<vmem>>, vector<1x8x512xbf16>
    %3 = vector.shape_cast %2 : vector<1x8x512xbf16> to vector<8x512xbf16>
    %4 = vector.shape_cast %1 : vector<8x512xbf16> to vector<1x8x512xbf16>
    tpu.vector_store %arg1[%c0_1, %c0_2, %c0_3], %4 {strides = array<i32>} : memref<8x8x512xbf16, #tpu.memory_space<vmem>>, vector<1x8x512xbf16>,
    %c0_4 = arith.constant 0 : index
    %c0_5 = arith.constant 0 : index
    %5 = vector.load %arg0[%c0_4, %c0_5] : memref<8x512xbf16, #tpu.memory_space<vmem>>, vector<8x512xbf16>
    %c15_i32 = arith.constant 15 : i32
    %6 = tpu.dynamic_rotate %5 by %c15_i32 dim 1 : vector<8x512xbf16>, i32 -> vector<8x512xbf16>
    %c1 = arith.constant 1 : index
    %c0_6 = arith.constant 0 : index
    %c0_7 = arith.constant 0 : index
    %7 = vector.load %arg1[%c1, %c0_6, %c0_7] : memref<8x8x512xbf16, #tpu.memory_space<vmem>>, vector<1x8x512xbf16>
    %8 = vector.shape_cast %7 : vector<1x8x512xbf16> to vector<8x512xbf16>
    %9 = vector.shape_cast %6 : vector<8x512xbf16> to vector<1x8x512xbf16>
    tpu.vector_store %arg1[%c1, %c0_6, %c0_7], %9 {strides = array<i32>} : memref<8x8x512xbf16, #tpu.memory_space<vmem>>, vector<1x8x512xbf16>,
    %c0_8 = arith.constant 0 : index
    %c0_9 = arith.constant 0 : index
    %10 = vector.load %arg0[%c0_8, %c0_9] : memref<8x512xbf16, #tpu.memory_space<vmem>>, vector<8x512xbf16>
    %c16_i32 = arith.constant 16 : i32
    %11 = tpu.dynamic_rotate %10 by %c16_i32 dim 1 : vector<8x512xbf16>, i32 -> vector<8x512xbf16>
    %c2 = arith.constant 2 : index
    %c0_10 = arith.constant 0 : index
    %c0_11 = arith.constant 0 : index
    %12 = vector.load %arg1[%c2, %c0_10, %c0_11] : memref<8x8x512xbf16, #tpu.memory_space<vmem>>, vector<1x8x512xbf16>
    %13 = vector.shape_cast %12 : vector<1x8x512xbf16> to vector<8x512xbf16>
    %14 = vector.shape_cast %11 : vector<8x512xbf16> to vector<1x8x512xbf16>
    tpu.vector_store %arg1[%c2, %c0_10, %c0_11], %14 {strides = array<i32>} : memref<8x8x512xbf16, #tpu.memory_space<vmem>>, vector<1x8x512xbf16>,
    %c0_12 = arith.constant 0 : index
    %c0_13 = arith.constant 0 : index
    %15 = vector.load %arg0[%c0_12, %c0_13] : memref<8x512xbf16, #tpu.memory_space<vmem>>, vector<8x512xbf16>
    %c240_i32 = arith.constant 240 : i32
    %16 = tpu.dynamic_rotate %15 by %c240_i32 dim 1 : vector<8x512xbf16>, i32 -> vector<8x512xbf16>
    %c3 = arith.constant 3 : index
    %c0_14 = arith.constant 0 : index
    %c0_15 = arith.constant 0 : index
    %17 = vector.load %arg1[%c3, %c0_14, %c0_15] : memref<8x8x512xbf16, #tpu.memory_space<vmem>>, vector<1x8x512xbf16>
    %18 = vector.shape_cast %17 : vector<1x8x512xbf16> to vector<8x512xbf16>
    %19 = vector.shape_cast %16 : vector<8x512xbf16> to vector<1x8x512xbf16>
    tpu.vector_store %arg1[%c3, %c0_14, %c0_15], %19 {strides = array<i32>} : memref<8x8x512xbf16, #tpu.memory_space<vmem>>, vector<1x8x512xbf16>,
    %c0_16 = arith.constant 0 : index
    %c0_17 = arith.constant 0 : index
    %20 = vector.load %arg0[%c0_16, %c0_17] : memref<8x512xbf16, #tpu.memory_space<vmem>>, vector<8x512xbf16>
    %c272_i32 = arith.constant 272 : i32
    %21 = tpu.dynamic_rotate %20 by %c272_i32 dim 1 : vector<8x512xbf16>, i32 -> vector<8x512xbf16>
    %c4 = arith.constant 4 : index
    %c0_18 = arith.constant 0 : index
    %c0_19 = arith.constant 0 : index
    %22 = vector.load %arg1[%c4, %c0_18, %c0_19] : memref<8x8x512xbf16, #tpu.memory_space<vmem>>, vector<1x8x512xbf16>
    %23 = vector.shape_cast %22 : vector<1x8x512xbf16> to vector<8x512xbf16>
    %24 = vector.shape_cast %21 : vector<8x512xbf16> to vector<1x8x512xbf16>
    tpu.vector_store %arg1[%c4, %c0_18, %c0_19], %24 {strides = array<i32>} : memref<8x8x512xbf16, #tpu.memory_space<vmem>>, vector<1x8x512xbf16>,
    %c0_20 = arith.constant 0 : index
    %c0_21 = arith.constant 0 : index
    %25 = vector.load %arg0[%c0_20, %c0_21] : memref<8x512xbf16, #tpu.memory_space<vmem>>, vector<8x512xbf16>
    %c496_i32 = arith.constant 496 : i32
    %26 = tpu.dynamic_rotate %25 by %c496_i32 dim 1 : vector<8x512xbf16>, i32 -> vector<8x512xbf16>
    %c5 = arith.constant 5 : index
    %c0_22 = arith.constant 0 : index
    %c0_23 = arith.constant 0 : index
    %27 = vector.load %arg1[%c5, %c0_22, %c0_23] : memref<8x8x512xbf16, #tpu.memory_space<vmem>>, vector<1x8x512xbf16>
    %28 = vector.shape_cast %27 : vector<1x8x512xbf16> to vector<8x512xbf16>
    %29 = vector.shape_cast %26 : vector<8x512xbf16> to vector<1x8x512xbf16>
    tpu.vector_store %arg1[%c5, %c0_22, %c0_23], %29 {strides = array<i32>} : memref<8x8x512xbf16, #tpu.memory_space<vmem>>, vector<1x8x512xbf16>,
    %c0_24 = arith.constant 0 : index
    %c0_25 = arith.constant 0 : index
    %30 = vector.load %arg0[%c0_24, %c0_25] : memref<8x512xbf16, #tpu.memory_space<vmem>>, vector<8x512xbf16>
    %c497_i32 = arith.constant 497 : i32
    %31 = tpu.dynamic_rotate %30 by %c497_i32 dim 1 : vector<8x512xbf16>, i32 -> vector<8x512xbf16>
    %c6 = arith.constant 6 : index
    %c0_26 = arith.constant 0 : index
    %c0_27 = arith.constant 0 : index
    %32 = vector.load %arg1[%c6, %c0_26, %c0_27] : memref<8x8x512xbf16, #tpu.memory_space<vmem>>, vector<1x8x512xbf16>
    %33 = vector.shape_cast %32 : vector<1x8x512xbf16> to vector<8x512xbf16>
    %34 = vector.shape_cast %31 : vector<8x512xbf16> to vector<1x8x512xbf16>
    tpu.vector_store %arg1[%c6, %c0_26, %c0_27], %34 {strides = array<i32>} : memref<8x8x512xbf16, #tpu.memory_space<vmem>>, vector<1x8x512xbf16>,
    %c0_28 = arith.constant 0 : index
    %c0_29 = arith.constant 0 : index
    %35 = vector.load %arg0[%c0_28, %c0_29] : memref<8x512xbf16, #tpu.memory_space<vmem>>, vector<8x512xbf16>
    %c511_i32 = arith.constant 511 : i32
    %36 = tpu.dynamic_rotate %35 by %c511_i32 dim 1 : vector<8x512xbf16>, i32 -> vector<8x512xbf16>
    %c7 = arith.constant 7 : index
    %c0_30 = arith.constant 0 : index
    %c0_31 = arith.constant 0 : index
    %37 = vector.load %arg1[%c7, %c0_30, %c0_31] : memref<8x8x512xbf16, #tpu.memory_space<vmem>>, vector<1x8x512xbf16>
    %38 = vector.shape_cast %37 : vector<1x8x512xbf16> to vector<8x512xbf16>
    %39 = vector.shape_cast %36 : vector<8x512xbf16> to vector<1x8x512xbf16>
    tpu.vector_store %arg1[%c7, %c0_30, %c0_31], %39 {strides = array<i32>} : memref<8x8x512xbf16, #tpu.memory_space<vmem>>, vector<1x8x512xbf16>,
    return
  }
}

module attributes {stable_mosaic.version = 11 : i64} {
  func.func @_scale_block_kernel(%arg0: memref<8x512xf32, #tpu.memory_space<vmem>>, %arg1: memref<16x12xf32, #tpu.memory_space<vmem>>, %arg2: memref<8x72xbf16, #tpu.memory_space<vmem>>, %arg3: memref<8x72xbf16, #tpu.memory_space<vmem>>, %arg4: memref<8x72xbf16, #tpu.memory_space<vmem>>, %arg5: memref<16x80xbf16, #tpu.memory_space<vmem>>, %arg6: memref<16x512xf32, #tpu.memory_space<vmem>>) attributes {dimension_semantics = [], scalar_prefetch = 0 : i64, scratch_operands = 0 : i64, tpu.core_type = #tpu.core_type<tc>} {
    %0 = tpu.iota {dimensions = array<i32: 1>} : vector<1x512xi32>
    %c16_i32 = arith.constant 16 : i32
    %c0_i32 = arith.constant 0 : i32
    %1 = arith.cmpi eq, %c16_i32, %c0_i32 : i32
    %c1_i32 = arith.constant 1 : i32
    %2 = arith.select %1, %c1_i32, %c16_i32 : i32
    %3 = vector.broadcast %2 : i32 to vector<1x512xi32>
    %4 = arith.remsi %0, %3 : vector<1x512xi32>
    %c0_i32_0 = arith.constant 0 : i32
    %5 = vector.broadcast %c0_i32_0 : i32 to vector<1x512xi32>
    %6 = arith.cmpi ne, %4, %5 : vector<1x512xi32>
    %c0_i32_1 = arith.constant 0 : i32
    %7 = vector.broadcast %c0_i32_1 : i32 to vector<1x512xi32>
    %8 = arith.cmpi slt, %4, %7 : vector<1x512xi32>
    %c0_i32_2 = arith.constant 0 : i32
    %9 = arith.cmpi slt, %2, %c0_i32_2 : i32
    %10 = vector.broadcast %9 : i1 to vector<1x512xi1>
    %11 = vector.broadcast %10 : vector<1x512xi1> to vector<1x512xi1>
    %12 = arith.xori %8, %11 : vector<1x512xi1>
    %13 = arith.andi %12, %6 : vector<1x512xi1>
    %14 = vector.broadcast %2 : i32 to vector<1x512xi32>
    %15 = arith.addi %4, %14 : vector<1x512xi32>
    %16 = arith.select %13, %15, %4 : vector<1x512xi1>, vector<1x512xi32>
    %c1_i32_3 = arith.constant 1 : i32
    %17 = vector.broadcast %c1_i32_3 : i32 to vector<1x512xi32>
    %18 = arith.cmpi slt, %16, %17 : vector<1x512xi32>
    %c15_i32 = arith.constant 15 : i32
    %19 = vector.broadcast %c15_i32 : i32 to vector<1x512xi32>
    %20 = arith.cmpi sge, %16, %19 : vector<1x512xi32>
    %c256_i32 = arith.constant 256 : i32
    %c0_i32_4 = arith.constant 0 : i32
    %21 = arith.cmpi eq, %c256_i32, %c0_i32_4 : i32
    %c1_i32_5 = arith.constant 1 : i32
    %22 = arith.select %21, %c1_i32_5, %c256_i32 : i32
    %23 = vector.broadcast %22 : i32 to vector<1x512xi32>
    %24 = arith.remsi %0, %23 : vector<1x512xi32>
    %c0_i32_6 = arith.constant 0 : i32
    %25 = vector.broadcast %c0_i32_6 : i32 to vector<1x512xi32>
    %26 = arith.cmpi ne, %24, %25 : vector<1x512xi32>
    %c0_i32_7 = arith.constant 0 : i32
    %27 = vector.broadcast %c0_i32_7 : i32 to vector<1x512xi32>
    %28 = arith.cmpi slt, %24, %27 : vector<1x512xi32>
    %c0_i32_8 = arith.constant 0 : i32
    %29 = arith.cmpi slt, %22, %c0_i32_8 : i32
    %30 = vector.broadcast %29 : i1 to vector<1x512xi1>
    %31 = vector.broadcast %30 : vector<1x512xi1> to vector<1x512xi1>
    %32 = arith.xori %28, %31 : vector<1x512xi1>
    %33 = arith.andi %32, %26 : vector<1x512xi1>
    %34 = vector.broadcast %22 : i32 to vector<1x512xi32>
    %35 = arith.addi %24, %34 : vector<1x512xi32>
    %36 = arith.select %33, %35, %24 : vector<1x512xi1>, vector<1x512xi32>
    %c16_i32_9 = arith.constant 16 : i32
    %37 = vector.broadcast %c16_i32_9 : i32 to vector<1x512xi32>
    %38 = arith.cmpi slt, %36, %37 : vector<1x512xi32>
    %c240_i32 = arith.constant 240 : i32
    %39 = vector.broadcast %c240_i32 : i32 to vector<1x512xi32>
    %40 = arith.cmpi sge, %36, %39 : vector<1x512xi32>
    %c0 = arith.constant 0 : index
    %c0_10 = arith.constant 0 : index
    %41 = vector.load %arg1[%c0, %c0_10] : memref<16x12xf32, #tpu.memory_space<vmem>>, vector<16x12xf32>
    %c0_11 = arith.constant 0 : index
    %c0_12 = arith.constant 0 : index
    %42 = vector.load %arg0[%c0_11, %c0_12] : memref<8x512xf32, #tpu.memory_space<vmem>>, vector<8x512xf32>
    %c0_13 = arith.constant 0 : index
    %c0_14 = arith.constant 0 : index
    %43 = vector.load %arg2[%c0_13, %c0_14] : memref<8x72xbf16, #tpu.memory_space<vmem>>, vector<8x72xbf16>
    %c0_15 = arith.constant 0 : index
    %c0_16 = arith.constant 0 : index
    %44 = vector.load %arg3[%c0_15, %c0_16] : memref<8x72xbf16, #tpu.memory_space<vmem>>, vector<8x72xbf16>
    %45 = vector.extract_strided_slice %41 {offsets = [0, 0], sizes = [8, 1], strides = [1, 1]} : vector<16x12xf32> to vector<8x1xf32>
    %46 = vector.extract_strided_slice %41 {offsets = [0, 1], sizes = [8, 1], strides = [1, 1]} : vector<16x12xf32> to vector<8x1xf32>
    %47 = vector.extract_strided_slice %41 {offsets = [0, 2], sizes = [8, 1], strides = [1, 1]} : vector<16x12xf32> to vector<8x1xf32>
    %48 = vector.extract_strided_slice %41 {offsets = [0, 3], sizes = [8, 1], strides = [1, 1]} : vector<16x12xf32> to vector<8x1xf32>
    %49 = vector.extract_strided_slice %41 {offsets = [0, 4], sizes = [8, 1], strides = [1, 1]} : vector<16x12xf32> to vector<8x1xf32>
    %50 = vector.extract_strided_slice %41 {offsets = [0, 5], sizes = [8, 1], strides = [1, 1]} : vector<16x12xf32> to vector<8x1xf32>
    %cst = arith.constant dense<0.000000e+00> : vector<8xf32>
    %51 = vector.multi_reduction <add>, %42, %cst [1] : vector<8x512xf32> to vector<8xf32>
    %52 = vector.shape_cast %51 : vector<8xf32> to vector<8x1xf32>
    %53 = arith.mulf %42, %42 : vector<8x512xf32>
    %cst_17 = arith.constant dense<0.000000e+00> : vector<8xf32>
    %54 = vector.multi_reduction <add>, %53, %cst_17 [1] : vector<8x512xf32> to vector<8xf32>
    %55 = vector.shape_cast %54 : vector<8xf32> to vector<8x1xf32>
    %cst_18 = arith.constant 0.001953125 : f32
    %56 = vector.broadcast %cst_18 : f32 to vector<8x1xf32>
    %57 = arith.mulf %52, %56 : vector<8x1xf32>
    %cst_19 = arith.constant 0.001953125 : f32
    %58 = vector.broadcast %cst_19 : f32 to vector<8x1xf32>
    %59 = arith.mulf %55, %58 : vector<8x1xf32>
    %60 = arith.mulf %57, %57 : vector<8x1xf32>
    %61 = arith.subf %59, %60 : vector<8x1xf32>
    %62 = vector.broadcast %57 : vector<8x1xf32> to vector<8x512xf32>
    %63 = arith.subf %42, %62 : vector<8x512xf32>
    %cst_20 = arith.constant 9.99999974E-6 : f32
    %64 = vector.broadcast %cst_20 : f32 to vector<8x1xf32>
    %65 = arith.addf %61, %64 : vector<8x1xf32>
    %66 = math.rsqrt %65 : vector<8x1xf32>
    %67 = vector.broadcast %66 : vector<8x1xf32> to vector<8x512xf32>
    %68 = arith.mulf %63, %67 : vector<8x512xf32>
    %69 = vector.broadcast %45 : vector<8x1xf32> to vector<8x512xf32>
    %70 = arith.mulf %68, %69 : vector<8x512xf32>
    %71 = vector.broadcast %46 : vector<8x1xf32> to vector<8x512xf32>
    %72 = arith.addf %70, %71 : vector<8x512xf32>
    %cst_21 = arith.constant 0.000000e+00 : f32
    %73 = vector.broadcast %cst_21 : f32 to vector<8x512xf32>
    %74 = arith.maximumf %72, %73 : vector<8x512xf32>
    %75 = arith.truncf %74 : vector<8x512xf32> to vector<8x512xbf16>
    %76 = vector.extract_strided_slice %75 {offsets = [0, 511], sizes = [8, 1], strides = [1, 1]} : vector<8x512xbf16> to vector<8x1xbf16>
    %77 = vector.extract_strided_slice %75 {offsets = [0, 0], sizes = [8, 511], strides = [1, 1]} : vector<8x512xbf16> to vector<8x511xbf16>
    %78 = tpu.concatenate %76, %77 in 1 : vector<8x1xbf16>, vector<8x511xbf16> -> vector<8x512xbf16>
    %79 = vector.extract_strided_slice %75 {offsets = [0, 15], sizes = [8, 497], strides = [1, 1]} : vector<8x512xbf16> to vector<8x497xbf16>
    %80 = vector.extract_strided_slice %75 {offsets = [0, 0], sizes = [8, 15], strides = [1, 1]} : vector<8x512xbf16> to vector<8x15xbf16>
    %81 = tpu.concatenate %79, %80 in 1 : vector<8x497xbf16>, vector<8x15xbf16> -> vector<8x512xbf16>
    %82 = vector.shape_cast %18 : vector<1x512xi1> to vector<1x512xi1>
    %83 = vector.broadcast %82 : vector<1x512xi1> to vector<8x512xi1>
    %84 = arith.select %83, %81, %78 : vector<8x512xi1>, vector<8x512xbf16>
    %85 = vector.extract_strided_slice %75 {offsets = [0, 1], sizes = [8, 511], strides = [1, 1]} : vector<8x512xbf16> to vector<8x511xbf16>
    %86 = vector.extract_strided_slice %75 {offsets = [0, 0], sizes = [8, 1], strides = [1, 1]} : vector<8x512xbf16> to vector<8x1xbf16>
    %87 = tpu.concatenate %85, %86 in 1 : vector<8x511xbf16>, vector<8x1xbf16> -> vector<8x512xbf16>
    %88 = vector.extract_strided_slice %75 {offsets = [0, 497], sizes = [8, 15], strides = [1, 1]} : vector<8x512xbf16> to vector<8x15xbf16>
    %89 = vector.extract_strided_slice %75 {offsets = [0, 0], sizes = [8, 497], strides = [1, 1]} : vector<8x512xbf16> to vector<8x497xbf16>
    %90 = tpu.concatenate %88, %89 in 1 : vector<8x15xbf16>, vector<8x497xbf16> -> vector<8x512xbf16>
    %91 = vector.shape_cast %20 : vector<1x512xi1> to vector<1x512xi1>
    %92 = vector.broadcast %91 : vector<1x512xi1> to vector<8x512xi1>
    %93 = arith.select %92, %90, %87 : vector<8x512xi1>, vector<8x512xbf16>
    %94 = tpu.concatenate %84, %75, %93 in 0 : vector<8x512xbf16>, vector<8x512xbf16>, vector<8x512xbf16> -> vector<24x512xbf16>
    %95 = vector.extract_strided_slice %94 {offsets = [0, 496], sizes = [24, 16], strides = [1, 1]} : vector<24x512xbf16> to vector<24x16xbf16>
    %96 = vector.extract_strided_slice %94 {offsets = [0, 0], sizes = [24, 496], strides = [1, 1]} : vector<24x512xbf16> to vector<24x496xbf16>
    %97 = tpu.concatenate %95, %96 in 1 : vector<24x16xbf16>, vector<24x496xbf16> -> vector<24x512xbf16>
    %98 = vector.extract_strided_slice %94 {offsets = [0, 240], sizes = [24, 272], strides = [1, 1]} : vector<24x512xbf16> to vector<24x272xbf16>
    %99 = vector.extract_strided_slice %94 {offsets = [0, 0], sizes = [24, 240], strides = [1, 1]} : vector<24x512xbf16> to vector<24x240xbf16>
    %100 = tpu.concatenate %98, %99 in 1 : vector<24x272xbf16>, vector<24x240xbf16> -> vector<24x512xbf16>
    %101 = vector.shape_cast %38 : vector<1x512xi1> to vector<1x512xi1>
    %102 = vector.broadcast %101 : vector<1x512xi1> to vector<24x512xi1>
    %103 = arith.select %102, %100, %97 : vector<24x512xi1>, vector<24x512xbf16>
    %104 = vector.extract_strided_slice %94 {offsets = [0, 16], sizes = [24, 496], strides = [1, 1]} : vector<24x512xbf16> to vector<24x496xbf16>
    %105 = vector.extract_strided_slice %94 {offsets = [0, 0], sizes = [24, 16], strides = [1, 1]} : vector<24x512xbf16> to vector<24x16xbf16>
    %106 = tpu.concatenate %104, %105 in 1 : vector<24x496xbf16>, vector<24x16xbf16> -> vector<24x512xbf16>
    %107 = vector.extract_strided_slice %94 {offsets = [0, 272], sizes = [24, 240], strides = [1, 1]} : vector<24x512xbf16> to vector<24x240xbf16>
    %108 = vector.extract_strided_slice %94 {offsets = [0, 0], sizes = [24, 272], strides = [1, 1]} : vector<24x512xbf16> to vector<24x272xbf16>
    %109 = tpu.concatenate %107, %108 in 1 : vector<24x240xbf16>, vector<24x272xbf16> -> vector<24x512xbf16>
    %110 = vector.shape_cast %40 : vector<1x512xi1> to vector<1x512xi1>
    %111 = vector.broadcast %110 : vector<1x512xi1> to vector<24x512xi1>
    %112 = arith.select %111, %109, %106 : vector<24x512xi1>, vector<24x512xbf16>
    %113 = tpu.concatenate %103, %94, %112 in 0 : vector<24x512xbf16>, vector<24x512xbf16>, vector<24x512xbf16> -> vector<72x512xbf16>
    %cst_22 = arith.constant dense<0.000000e+00> : vector<8x512xf32>
    %114 = tpu.matmul %43, %113, %cst_22 {dimension_numbers = #tpu.dot_dimension_numbers<[1], [0], [0], [1], [0, 0, 1, 1], [], []>} : vector<8x72xbf16>, vector<72x512xbf16>, vector<8x512xf32> -> vector<8x512xf32>
    %115 = vector.broadcast %47 : vector<8x1xf32> to vector<8x512xf32>
    %116 = arith.addf %114, %115 : vector<8x512xf32>
    %cst_23 = arith.constant dense<0.000000e+00> : vector<8xf32>
    %117 = vector.multi_reduction <add>, %116, %cst_23 [1] : vector<8x512xf32> to vector<8xf32>
    %118 = vector.shape_cast %117 : vector<8xf32> to vector<8x1xf32>
    %119 = arith.mulf %116, %116 : vector<8x512xf32>
    %cst_24 = arith.constant dense<0.000000e+00> : vector<8xf32>
    %120 = vector.multi_reduction <add>, %119, %cst_24 [1] : vector<8x512xf32> to vector<8xf32>
    %121 = vector.shape_cast %120 : vector<8xf32> to vector<8x1xf32>
    %cst_25 = arith.constant 0.001953125 : f32
    %122 = vector.broadcast %cst_25 : f32 to vector<8x1xf32>
    %123 = arith.mulf %118, %122 : vector<8x1xf32>
    %cst_26 = arith.constant 0.001953125 : f32
    %124 = vector.broadcast %cst_26 : f32 to vector<8x1xf32>
    %125 = arith.mulf %121, %124 : vector<8x1xf32>
    %126 = arith.mulf %123, %123 : vector<8x1xf32>
    %127 = arith.subf %125, %126 : vector<8x1xf32>
    %128 = vector.broadcast %123 : vector<8x1xf32> to vector<8x512xf32>
    %129 = arith.subf %116, %128 : vector<8x512xf32>
    %cst_27 = arith.constant 9.99999974E-6 : f32
    %130 = vector.broadcast %cst_27 : f32 to vector<8x1xf32>
    %131 = arith.addf %127, %130 : vector<8x1xf32>
    %132 = math.rsqrt %131 : vector<8x1xf32>
    %133 = vector.broadcast %132 : vector<8x1xf32> to vector<8x512xf32>
    %134 = arith.mulf %129, %133 : vector<8x512xf32>
    %135 = vector.broadcast %48 : vector<8x1xf32> to vector<8x512xf32>
    %136 = arith.mulf %134, %135 : vector<8x512xf32>
    %137 = vector.broadcast %49 : vector<8x1xf32> to vector<8x512xf32>
    %138 = arith.addf %136, %137 : vector<8x512xf32>
    %cst_28 = arith.constant 0.000000e+00 : f32
    %139 = vector.broadcast %cst_28 : f32 to vector<8x512xf32>
    %140 = arith.maximumf %138, %139 : vector<8x512xf32>
    %141 = arith.truncf %140 : vector<8x512xf32> to vector<8x512xbf16>
    %142 = vector.extract_strided_slice %141 {offsets = [0, 511], sizes = [8, 1], strides = [1, 1]} : vector<8x512xbf16> to vector<8x1xbf16>
    %143 = vector.extract_strided_slice %141 {offsets = [0, 0], sizes = [8, 511], strides = [1, 1]} : vector<8x512xbf16> to vector<8x511xbf16>
    %144 = tpu.concatenate %142, %143 in 1 : vector<8x1xbf16>, vector<8x511xbf16> -> vector<8x512xbf16>
    %145 = vector.extract_strided_slice %141 {offsets = [0, 15], sizes = [8, 497], strides = [1, 1]} : vector<8x512xbf16> to vector<8x497xbf16>
    %146 = vector.extract_strided_slice %141 {offsets = [0, 0], sizes = [8, 15], strides = [1, 1]} : vector<8x512xbf16> to vector<8x15xbf16>
    %147 = tpu.concatenate %145, %146 in 1 : vector<8x497xbf16>, vector<8x15xbf16> -> vector<8x512xbf16>
    %148 = vector.shape_cast %18 : vector<1x512xi1> to vector<1x512xi1>
    %149 = vector.broadcast %148 : vector<1x512xi1> to vector<8x512xi1>
    %150 = arith.select %149, %147, %144 : vector<8x512xi1>, vector<8x512xbf16>
    %151 = vector.extract_strided_slice %141 {offsets = [0, 1], sizes = [8, 511], strides = [1, 1]} : vector<8x512xbf16> to vector<8x511xbf16>
    %152 = vector.extract_strided_slice %141 {offsets = [0, 0], sizes = [8, 1], strides = [1, 1]} : vector<8x512xbf16> to vector<8x1xbf16>
    %153 = tpu.concatenate %151, %152 in 1 : vector<8x511xbf16>, vector<8x1xbf16> -> vector<8x512xbf16>
    %154 = vector.extract_strided_slice %141 {offsets = [0, 497], sizes = [8, 15], strides = [1, 1]} : vector<8x512xbf16> to vector<8x15xbf16>
    %155 = vector.extract_strided_slice %141 {offsets = [0, 0], sizes = [8, 497], strides = [1, 1]} : vector<8x512xbf16> to vector<8x497xbf16>
    %156 = tpu.concatenate %154, %155 in 1 : vector<8x15xbf16>, vector<8x497xbf16> -> vector<8x512xbf16>
    %157 = vector.shape_cast %20 : vector<1x512xi1> to vector<1x512xi1>
    %158 = vector.broadcast %157 : vector<1x512xi1> to vector<8x512xi1>
    %159 = arith.select %158, %156, %153 : vector<8x512xi1>, vector<8x512xbf16>
    %160 = tpu.concatenate %150, %141, %159 in 0 : vector<8x512xbf16>, vector<8x512xbf16>, vector<8x512xbf16> -> vector<24x512xbf16>
    %161 = vector.extract_strided_slice %160 {offsets = [0, 496], sizes = [24, 16], strides = [1, 1]} : vector<24x512xbf16> to vector<24x16xbf16>
    %162 = vector.extract_strided_slice %160 {offsets = [0, 0], sizes = [24, 496], strides = [1, 1]} : vector<24x512xbf16> to vector<24x496xbf16>
    %163 = tpu.concatenate %161, %162 in 1 : vector<24x16xbf16>, vector<24x496xbf16> -> vector<24x512xbf16>
    %164 = vector.extract_strided_slice %160 {offsets = [0, 240], sizes = [24, 272], strides = [1, 1]} : vector<24x512xbf16> to vector<24x272xbf16>
    %165 = vector.extract_strided_slice %160 {offsets = [0, 0], sizes = [24, 240], strides = [1, 1]} : vector<24x512xbf16> to vector<24x240xbf16>
    %166 = tpu.concatenate %164, %165 in 1 : vector<24x272xbf16>, vector<24x240xbf16> -> vector<24x512xbf16>
    %167 = vector.shape_cast %38 : vector<1x512xi1> to vector<1x512xi1>
    %168 = vector.broadcast %167 : vector<1x512xi1> to vector<24x512xi1>
    %169 = arith.select %168, %166, %163 : vector<24x512xi1>, vector<24x512xbf16>
    %170 = vector.extract_strided_slice %160 {offsets = [0, 16], sizes = [24, 496], strides = [1, 1]} : vector<24x512xbf16> to vector<24x496xbf16>
    %171 = vector.extract_strided_slice %160 {offsets = [0, 0], sizes = [24, 16], strides = [1, 1]} : vector<24x512xbf16> to vector<24x16xbf16>
    %172 = tpu.concatenate %170, %171 in 1 : vector<24x496xbf16>, vector<24x16xbf16> -> vector<24x512xbf16>
    %173 = vector.extract_strided_slice %160 {offsets = [0, 272], sizes = [24, 240], strides = [1, 1]} : vector<24x512xbf16> to vector<24x240xbf16>
    %174 = vector.extract_strided_slice %160 {offsets = [0, 0], sizes = [24, 272], strides = [1, 1]} : vector<24x512xbf16> to vector<24x272xbf16>
    %175 = tpu.concatenate %173, %174 in 1 : vector<24x240xbf16>, vector<24x272xbf16> -> vector<24x512xbf16>
    %176 = vector.shape_cast %40 : vector<1x512xi1> to vector<1x512xi1>
    %177 = vector.broadcast %176 : vector<1x512xi1> to vector<24x512xi1>
    %178 = arith.select %177, %175, %172 : vector<24x512xi1>, vector<24x512xbf16>
    %179 = tpu.concatenate %169, %160, %178 in 0 : vector<24x512xbf16>, vector<24x512xbf16>, vector<24x512xbf16> -> vector<72x512xbf16>
    %cst_29 = arith.constant dense<0.000000e+00> : vector<8x512xf32>
    %180 = tpu.matmul %44, %179, %cst_29 {dimension_numbers = #tpu.dot_dimension_numbers<[1], [0], [0], [1], [0, 0, 1, 1], [], []>} : vector<8x72xbf16>, vector<72x512xbf16>, vector<8x512xf32> -> vector<8x512xf32>
    %181 = vector.broadcast %50 : vector<8x1xf32> to vector<8x512xf32>
    %182 = arith.addf %180, %181 : vector<8x512xf32>
    %183 = arith.addf %182, %42 : vector<8x512xf32>
    %c0_30 = arith.constant 0 : index
    %c0_31 = arith.constant 0 : index
    %184 = vector.load %arg4[%c0_30, %c0_31] : memref<8x72xbf16, #tpu.memory_space<vmem>>, vector<8x72xbf16>
    %c0_32 = arith.constant 0 : index
    %c0_33 = arith.constant 0 : index
    %185 = vector.load %arg5[%c0_32, %c0_33] : memref<16x80xbf16, #tpu.memory_space<vmem>>, vector<16x80xbf16>
    %186 = vector.extract_strided_slice %41 {offsets = [0, 6], sizes = [8, 1], strides = [1, 1]} : vector<16x12xf32> to vector<8x1xf32>
    %187 = vector.extract_strided_slice %41 {offsets = [0, 7], sizes = [8, 1], strides = [1, 1]} : vector<16x12xf32> to vector<8x1xf32>
    %188 = vector.extract_strided_slice %41 {offsets = [0, 8], sizes = [8, 1], strides = [1, 1]} : vector<16x12xf32> to vector<8x1xf32>
    %189 = vector.extract_strided_slice %41 {offsets = [0, 9], sizes = [8, 1], strides = [1, 1]} : vector<16x12xf32> to vector<8x1xf32>
    %190 = vector.extract_strided_slice %41 {offsets = [0, 10], sizes = [8, 1], strides = [1, 1]} : vector<16x12xf32> to vector<8x1xf32>
    %191 = vector.extract_strided_slice %41 {offsets = [0, 11], sizes = [16, 1], strides = [1, 1]} : vector<16x12xf32> to vector<16x1xf32>
    %cst_34 = arith.constant dense<0.000000e+00> : vector<8xf32>
    %192 = vector.multi_reduction <add>, %183, %cst_34 [1] : vector<8x512xf32> to vector<8xf32>
    %193 = vector.shape_cast %192 : vector<8xf32> to vector<8x1xf32>
    %194 = arith.mulf %183, %183 : vector<8x512xf32>
    %cst_35 = arith.constant dense<0.000000e+00> : vector<8xf32>
    %195 = vector.multi_reduction <add>, %194, %cst_35 [1] : vector<8x512xf32> to vector<8xf32>
    %196 = vector.shape_cast %195 : vector<8xf32> to vector<8x1xf32>
    %cst_36 = arith.constant 0.001953125 : f32
    %197 = vector.broadcast %cst_36 : f32 to vector<8x1xf32>
    %198 = arith.mulf %193, %197 : vector<8x1xf32>
    %cst_37 = arith.constant 0.001953125 : f32
    %199 = vector.broadcast %cst_37 : f32 to vector<8x1xf32>
    %200 = arith.mulf %196, %199 : vector<8x1xf32>
    %201 = arith.mulf %198, %198 : vector<8x1xf32>
    %202 = arith.subf %200, %201 : vector<8x1xf32>
    %203 = vector.broadcast %198 : vector<8x1xf32> to vector<8x512xf32>
    %204 = arith.subf %183, %203 : vector<8x512xf32>
    %cst_38 = arith.constant 9.99999974E-6 : f32
    %205 = vector.broadcast %cst_38 : f32 to vector<8x1xf32>
    %206 = arith.addf %202, %205 : vector<8x1xf32>
    %207 = math.rsqrt %206 : vector<8x1xf32>
    %208 = vector.broadcast %207 : vector<8x1xf32> to vector<8x512xf32>
    %209 = arith.mulf %204, %208 : vector<8x512xf32>
    %210 = vector.broadcast %186 : vector<8x1xf32> to vector<8x512xf32>
    %211 = arith.mulf %209, %210 : vector<8x512xf32>
    %212 = vector.broadcast %187 : vector<8x1xf32> to vector<8x512xf32>
    %213 = arith.addf %211, %212 : vector<8x512xf32>
    %cst_39 = arith.constant 0.000000e+00 : f32
    %214 = vector.broadcast %cst_39 : f32 to vector<8x512xf32>
    %215 = arith.maximumf %213, %214 : vector<8x512xf32>
    %216 = arith.truncf %215 : vector<8x512xf32> to vector<8x512xbf16>
    %217 = vector.extract_strided_slice %216 {offsets = [0, 511], sizes = [8, 1], strides = [1, 1]} : vector<8x512xbf16> to vector<8x1xbf16>
    %218 = vector.extract_strided_slice %216 {offsets = [0, 0], sizes = [8, 511], strides = [1, 1]} : vector<8x512xbf16> to vector<8x511xbf16>
    %219 = tpu.concatenate %217, %218 in 1 : vector<8x1xbf16>, vector<8x511xbf16> -> vector<8x512xbf16>
    %220 = vector.extract_strided_slice %216 {offsets = [0, 15], sizes = [8, 497], strides = [1, 1]} : vector<8x512xbf16> to vector<8x497xbf16>
    %221 = vector.extract_strided_slice %216 {offsets = [0, 0], sizes = [8, 15], strides = [1, 1]} : vector<8x512xbf16> to vector<8x15xbf16>
    %222 = tpu.concatenate %220, %221 in 1 : vector<8x497xbf16>, vector<8x15xbf16> -> vector<8x512xbf16>
    %223 = vector.shape_cast %18 : vector<1x512xi1> to vector<1x512xi1>
    %224 = vector.broadcast %223 : vector<1x512xi1> to vector<8x512xi1>
    %225 = arith.select %224, %222, %219 : vector<8x512xi1>, vector<8x512xbf16>
    %226 = vector.extract_strided_slice %216 {offsets = [0, 1], sizes = [8, 511], strides = [1, 1]} : vector<8x512xbf16> to vector<8x511xbf16>
    %227 = vector.extract_strided_slice %216 {offsets = [0, 0], sizes = [8, 1], strides = [1, 1]} : vector<8x512xbf16> to vector<8x1xbf16>
    %228 = tpu.concatenate %226, %227 in 1 : vector<8x511xbf16>, vector<8x1xbf16> -> vector<8x512xbf16>
    %229 = vector.extract_strided_slice %216 {offsets = [0, 497], sizes = [8, 15], strides = [1, 1]} : vector<8x512xbf16> to vector<8x15xbf16>
    %230 = vector.extract_strided_slice %216 {offsets = [0, 0], sizes = [8, 497], strides = [1, 1]} : vector<8x512xbf16> to vector<8x497xbf16>
    %231 = tpu.concatenate %229, %230 in 1 : vector<8x15xbf16>, vector<8x497xbf16> -> vector<8x512xbf16>
    %232 = vector.shape_cast %20 : vector<1x512xi1> to vector<1x512xi1>
    %233 = vector.broadcast %232 : vector<1x512xi1> to vector<8x512xi1>
    %234 = arith.select %233, %231, %228 : vector<8x512xi1>, vector<8x512xbf16>
    %235 = tpu.concatenate %225, %216, %234 in 0 : vector<8x512xbf16>, vector<8x512xbf16>, vector<8x512xbf16> -> vector<24x512xbf16>
    %236 = vector.extract_strided_slice %235 {offsets = [0, 496], sizes = [24, 16], strides = [1, 1]} : vector<24x512xbf16> to vector<24x16xbf16>
    %237 = vector.extract_strided_slice %235 {offsets = [0, 0], sizes = [24, 496], strides = [1, 1]} : vector<24x512xbf16> to vector<24x496xbf16>
    %238 = tpu.concatenate %236, %237 in 1 : vector<24x16xbf16>, vector<24x496xbf16> -> vector<24x512xbf16>
    %239 = vector.extract_strided_slice %235 {offsets = [0, 240], sizes = [24, 272], strides = [1, 1]} : vector<24x512xbf16> to vector<24x272xbf16>
    %240 = vector.extract_strided_slice %235 {offsets = [0, 0], sizes = [24, 240], strides = [1, 1]} : vector<24x512xbf16> to vector<24x240xbf16>
    %241 = tpu.concatenate %239, %240 in 1 : vector<24x272xbf16>, vector<24x240xbf16> -> vector<24x512xbf16>
    %242 = vector.shape_cast %38 : vector<1x512xi1> to vector<1x512xi1>
    %243 = vector.broadcast %242 : vector<1x512xi1> to vector<24x512xi1>
    %244 = arith.select %243, %241, %238 : vector<24x512xi1>, vector<24x512xbf16>
    %245 = vector.extract_strided_slice %235 {offsets = [0, 16], sizes = [24, 496], strides = [1, 1]} : vector<24x512xbf16> to vector<24x496xbf16>
    %246 = vector.extract_strided_slice %235 {offsets = [0, 0], sizes = [24, 16], strides = [1, 1]} : vector<24x512xbf16> to vector<24x16xbf16>
    %247 = tpu.concatenate %245, %246 in 1 : vector<24x496xbf16>, vector<24x16xbf16> -> vector<24x512xbf16>
    %248 = vector.extract_strided_slice %235 {offsets = [0, 272], sizes = [24, 240], strides = [1, 1]} : vector<24x512xbf16> to vector<24x240xbf16>
    %249 = vector.extract_strided_slice %235 {offsets = [0, 0], sizes = [24, 272], strides = [1, 1]} : vector<24x512xbf16> to vector<24x272xbf16>
    %250 = tpu.concatenate %248, %249 in 1 : vector<24x240xbf16>, vector<24x272xbf16> -> vector<24x512xbf16>
    %251 = vector.shape_cast %40 : vector<1x512xi1> to vector<1x512xi1>
    %252 = vector.broadcast %251 : vector<1x512xi1> to vector<24x512xi1>
    %253 = arith.select %252, %250, %247 : vector<24x512xi1>, vector<24x512xbf16>
    %254 = tpu.concatenate %244, %235, %253 in 0 : vector<24x512xbf16>, vector<24x512xbf16>, vector<24x512xbf16> -> vector<72x512xbf16>
    %cst_40 = arith.constant dense<0.000000e+00> : vector<8x512xf32>
    %255 = tpu.matmul %184, %254, %cst_40 {dimension_numbers = #tpu.dot_dimension_numbers<[1], [0], [0], [1], [0, 0, 1, 1], [], []>} : vector<8x72xbf16>, vector<72x512xbf16>, vector<8x512xf32> -> vector<8x512xf32>
    %256 = vector.broadcast %188 : vector<8x1xf32> to vector<8x512xf32>
    %257 = arith.addf %255, %256 : vector<8x512xf32>
    %cst_41 = arith.constant dense<0.000000e+00> : vector<8xf32>
    %258 = vector.multi_reduction <add>, %257, %cst_41 [1] : vector<8x512xf32> to vector<8xf32>
    %259 = vector.shape_cast %258 : vector<8xf32> to vector<8x1xf32>
    %260 = arith.mulf %257, %257 : vector<8x512xf32>
    %cst_42 = arith.constant dense<0.000000e+00> : vector<8xf32>
    %261 = vector.multi_reduction <add>, %260, %cst_42 [1] : vector<8x512xf32> to vector<8xf32>
    %262 = vector.shape_cast %261 : vector<8xf32> to vector<8x1xf32>
    %cst_43 = arith.constant 0.001953125 : f32
    %263 = vector.broadcast %cst_43 : f32 to vector<8x1xf32>
    %264 = arith.mulf %259, %263 : vector<8x1xf32>
    %cst_44 = arith.constant 0.001953125 : f32
    %265 = vector.broadcast %cst_44 : f32 to vector<8x1xf32>
    %266 = arith.mulf %262, %265 : vector<8x1xf32>
    %267 = arith.mulf %264, %264 : vector<8x1xf32>
    %268 = arith.subf %266, %267 : vector<8x1xf32>
    %269 = vector.broadcast %264 : vector<8x1xf32> to vector<8x512xf32>
    %270 = arith.subf %257, %269 : vector<8x512xf32>
    %cst_45 = arith.constant 9.99999974E-6 : f32
    %271 = vector.broadcast %cst_45 : f32 to vector<8x1xf32>
    %272 = arith.addf %268, %271 : vector<8x1xf32>
    %273 = math.rsqrt %272 : vector<8x1xf32>
    %274 = vector.broadcast %273 : vector<8x1xf32> to vector<8x512xf32>
    %275 = arith.mulf %270, %274 : vector<8x512xf32>
    %276 = vector.broadcast %189 : vector<8x1xf32> to vector<8x512xf32>
    %277 = arith.mulf %275, %276 : vector<8x512xf32>
    %278 = vector.broadcast %190 : vector<8x1xf32> to vector<8x512xf32>
    %279 = arith.addf %277, %278 : vector<8x512xf32>
    %cst_46 = arith.constant 0.000000e+00 : f32
    %280 = vector.broadcast %cst_46 : f32 to vector<8x512xf32>
    %281 = arith.maximumf %279, %280 : vector<8x512xf32>
    %282 = arith.truncf %281 : vector<8x512xf32> to vector<8x512xbf16>
    %283 = vector.extract_strided_slice %282 {offsets = [0, 511], sizes = [8, 1], strides = [1, 1]} : vector<8x512xbf16> to vector<8x1xbf16>
    %284 = vector.extract_strided_slice %282 {offsets = [0, 0], sizes = [8, 511], strides = [1, 1]} : vector<8x512xbf16> to vector<8x511xbf16>
    %285 = tpu.concatenate %283, %284 in 1 : vector<8x1xbf16>, vector<8x511xbf16> -> vector<8x512xbf16>
    %286 = vector.extract_strided_slice %282 {offsets = [0, 15], sizes = [8, 497], strides = [1, 1]} : vector<8x512xbf16> to vector<8x497xbf16>
    %287 = vector.extract_strided_slice %282 {offsets = [0, 0], sizes = [8, 15], strides = [1, 1]} : vector<8x512xbf16> to vector<8x15xbf16>
    %288 = tpu.concatenate %286, %287 in 1 : vector<8x497xbf16>, vector<8x15xbf16> -> vector<8x512xbf16>
    %289 = vector.shape_cast %18 : vector<1x512xi1> to vector<1x512xi1>
    %290 = vector.broadcast %289 : vector<1x512xi1> to vector<8x512xi1>
    %291 = arith.select %290, %288, %285 : vector<8x512xi1>, vector<8x512xbf16>
    %292 = vector.extract_strided_slice %282 {offsets = [0, 1], sizes = [8, 511], strides = [1, 1]} : vector<8x512xbf16> to vector<8x511xbf16>
    %293 = vector.extract_strided_slice %282 {offsets = [0, 0], sizes = [8, 1], strides = [1, 1]} : vector<8x512xbf16> to vector<8x1xbf16>
    %294 = tpu.concatenate %292, %293 in 1 : vector<8x511xbf16>, vector<8x1xbf16> -> vector<8x512xbf16>
    %295 = vector.extract_strided_slice %282 {offsets = [0, 497], sizes = [8, 15], strides = [1, 1]} : vector<8x512xbf16> to vector<8x15xbf16>
    %296 = vector.extract_strided_slice %282 {offsets = [0, 0], sizes = [8, 497], strides = [1, 1]} : vector<8x512xbf16> to vector<8x497xbf16>
    %297 = tpu.concatenate %295, %296 in 1 : vector<8x15xbf16>, vector<8x497xbf16> -> vector<8x512xbf16>
    %298 = vector.shape_cast %20 : vector<1x512xi1> to vector<1x512xi1>
    %299 = vector.broadcast %298 : vector<1x512xi1> to vector<8x512xi1>
    %300 = arith.select %299, %297, %294 : vector<8x512xi1>, vector<8x512xbf16>
    %301 = tpu.concatenate %291, %282, %300 in 0 : vector<8x512xbf16>, vector<8x512xbf16>, vector<8x512xbf16> -> vector<24x512xbf16>
    %302 = vector.extract_strided_slice %301 {offsets = [0, 496], sizes = [24, 16], strides = [1, 1]} : vector<24x512xbf16> to vector<24x16xbf16>
    %303 = vector.extract_strided_slice %301 {offsets = [0, 0], sizes = [24, 496], strides = [1, 1]} : vector<24x512xbf16> to vector<24x496xbf16>
    %304 = tpu.concatenate %302, %303 in 1 : vector<24x16xbf16>, vector<24x496xbf16> -> vector<24x512xbf16>
    %305 = vector.extract_strided_slice %301 {offsets = [0, 240], sizes = [24, 272], strides = [1, 1]} : vector<24x512xbf16> to vector<24x272xbf16>
    %306 = vector.extract_strided_slice %301 {offsets = [0, 0], sizes = [24, 240], strides = [1, 1]} : vector<24x512xbf16> to vector<24x240xbf16>
    %307 = tpu.concatenate %305, %306 in 1 : vector<24x272xbf16>, vector<24x240xbf16> -> vector<24x512xbf16>
    %308 = vector.shape_cast %38 : vector<1x512xi1> to vector<1x512xi1>
    %309 = vector.broadcast %308 : vector<1x512xi1> to vector<24x512xi1>
    %310 = arith.select %309, %307, %304 : vector<24x512xi1>, vector<24x512xbf16>
    %311 = vector.extract_strided_slice %301 {offsets = [0, 16], sizes = [24, 496], strides = [1, 1]} : vector<24x512xbf16> to vector<24x496xbf16>
    %312 = vector.extract_strided_slice %301 {offsets = [0, 0], sizes = [24, 16], strides = [1, 1]} : vector<24x512xbf16> to vector<24x16xbf16>
    %313 = tpu.concatenate %311, %312 in 1 : vector<24x496xbf16>, vector<24x16xbf16> -> vector<24x512xbf16>
    %314 = vector.extract_strided_slice %301 {offsets = [0, 272], sizes = [24, 240], strides = [1, 1]} : vector<24x512xbf16> to vector<24x240xbf16>
    %315 = vector.extract_strided_slice %301 {offsets = [0, 0], sizes = [24, 272], strides = [1, 1]} : vector<24x512xbf16> to vector<24x272xbf16>
    %316 = tpu.concatenate %314, %315 in 1 : vector<24x240xbf16>, vector<24x272xbf16> -> vector<24x512xbf16>
    %317 = vector.shape_cast %40 : vector<1x512xi1> to vector<1x512xi1>
    %318 = vector.broadcast %317 : vector<1x512xi1> to vector<24x512xi1>
    %319 = arith.select %318, %316, %313 : vector<24x512xi1>, vector<24x512xbf16>
    %320 = tpu.concatenate %310, %301, %319 in 0 : vector<24x512xbf16>, vector<24x512xbf16>, vector<24x512xbf16> -> vector<72x512xbf16>
    %321 = arith.truncf %183 : vector<8x512xf32> to vector<8x512xbf16>
    %322 = tpu.concatenate %320, %321 in 0 : vector<72x512xbf16>, vector<8x512xbf16> -> vector<80x512xbf16>
    %cst_47 = arith.constant dense<0.000000e+00> : vector<16x512xf32>
    %323 = tpu.matmul %185, %322, %cst_47 {dimension_numbers = #tpu.dot_dimension_numbers<[1], [0], [0], [1], [0, 0, 1, 1], [], []>} : vector<16x80xbf16>, vector<80x512xbf16>, vector<16x512xf32> -> vector<16x512xf32>
    %324 = vector.broadcast %191 : vector<16x1xf32> to vector<16x512xf32>
    %325 = arith.addf %323, %324 : vector<16x512xf32>
    %c0_48 = arith.constant 0 : index
    %c0_49 = arith.constant 0 : index
    %326 = vector.load %arg6[%c0_48, %c0_49] : memref<16x512xf32, #tpu.memory_space<vmem>>, vector<16x512xf32>
    tpu.vector_store %arg6[%c0_48, %c0_49], %325 {strides = array<i32>} : memref<16x512xf32, #tpu.memory_space<vmem>>, vector<16x512xf32>,
    return
  }
}

</mosaic_0001>

<llo_original>
// kernel: tpu_custom_call.1
$region0: #{tpu_custom_call.1}
  #allocation0 [shape = 'u32[]', space=smem, size = 0x4, offset = 0x4, fixed_abs, tag = 'smem constant byte address 0x4 - core index']
  #allocation1 [shape = 'u32[144,128]{1,0:T(1,128)}', space=vmem, size = 0x12000, scoped, tag = 'internal scratch']
  %s0 = inlined_call_operand.hbm [shape: f32[8,512], index: 0, kind: input, shape index: {}]
  %s1 = inlined_call_operand.hbm [shape: f32[16,12], index: 1, kind: input, shape index: {}]
  %s2 = inlined_call_operand.hbm [shape: bf16[8,72], index: 2, kind: input, shape index: {}]
  %s3 = inlined_call_operand.hbm [shape: bf16[8,72], index: 3, kind: input, shape index: {}]
  %s4 = inlined_call_operand.hbm [shape: bf16[8,72], index: 4, kind: input, shape index: {}]
  %s5 = inlined_call_operand.vmem [shape: bf16[16,80], index: 5, kind: input, shape index: {}]
  %s6 = inlined_call_operand.hbm [shape: f32[16,512], index: 6, kind: output, shape index: {}]
  %s7 = sld [smem:[#allocation0]]
  $region54: #{tpu_custom_call.1} parent=0
    _
  %s9 = ssub.s32 1, %s7
  %s10 = scalar_select 0, %s9, %s7
  $region1: #{tpu_custom_call.1} parent=0
    #allocation2 [shape = 'u8[16384]{0}', space=vmem, size = 0x4000, scoped, tag = 'input window, operand 0, single buffered']
    #allocation3 [shape = 's32[1]{0}', space=sflag, size = 0x4, scoped, tag = 'scoped memory for tpu_custom_call.1']
    #allocation4 [shape = 's32[1]{0}', space=sflag, size = 0x4, scoped, tag = 'scoped memory for tpu_custom_call.1']
    #allocation5 [shape = 'u8[8192]{0}', space=vmem, size = 0x2000, scoped, tag = 'input window, operand 1, single buffered']
    #allocation6 [shape = 's32[1]{0}', space=sflag, size = 0x4, scoped, tag = 'scoped memory for tpu_custom_call.1']
    #allocation7 [shape = 'u8[2048]{0}', space=vmem, size = 0x800, scoped, tag = 'input window, operand 2, single buffered']
    #allocation8 [shape = 'u8[2048]{0}', space=vmem, size = 0x800, scoped, tag = 'input window, operand 3, single buffered']
    #allocation9 [shape = 's32[1]{0}', space=sflag, size = 0x4, scoped, tag = 'scoped memory for tpu_custom_call.1']
    #allocation10 [shape = 'u8[2048]{0}', space=vmem, size = 0x800, scoped, tag = 'input window, operand 4, single buffered']
    #allocation11 [shape = 'u8[32768]{0}', space=vmem, size = 0x8000, scoped, tag = 'output window, operand 0, single buffered']
    %11 = vsyncpa [#allocation3], 0
    %12 = vsyncpa [#allocation6], 0
    %13 = vsyncpa [#allocation9], 0
    %14 = vsyncpa [#allocation4], 0
    // Predicated region
    $region2: #{tpu_custom_call.1} parent=1 // pred_check
      _
    $region3: #{tpu_custom_call.1} parent=1 // pred_check_branch
      %16 = sbr.rel (0) target = $region5
    $region4: #{tpu_custom_call.1} parent=1 // pred_region
      %s18 = ssub.s32 512, 512
      %19 = vsyncadd [#allocation3], %s18
      %s21 = sshll.u32 [#allocation2], 4
      %s22 = int_to_ptr.vmem [resolvable:$true] %s21
      %24 = dma.hbm_to_vmem [thread:$0]  %s0, 512, %s22, [#allocation3]
    $region5: #{tpu_custom_call.1} parent=1 // pred_fallthru
      _
    // Predicated region
    $region6: #{tpu_custom_call.1} parent=1 // pred_check
      _
    $region7: #{tpu_custom_call.1} parent=1 // pred_check_branch
      %26 = sbr.rel (0) target = $region9
    $region8: #{tpu_custom_call.1} parent=1 // pred_region
      %s28 = ssub.s32 256, 256
      %29 = vsyncadd [#allocation6], %s28
      %s30 = sshll.u32 [#allocation5], 4
      %s31 = int_to_ptr.vmem [resolvable:$true] %s30
      %36 = dma.hbm_to_vmem [thread:$0]  %s1, 256, %s31, [#allocation6], 128, 128, 8
    $region9: #{tpu_custom_call.1} parent=1 // pred_fallthru
      _
    // Predicated region
    $region10: #{tpu_custom_call.1} parent=1 // pred_check
      _
    $region11: #{tpu_custom_call.1} parent=1 // pred_check_branch
      %38 = sbr.rel (0) target = $region13
    $region12: #{tpu_custom_call.1} parent=1 // pred_region
      %s40 = ssub.s32 64, 64
      %41 = vsyncadd [#allocation6], %s40
      %s43 = sshll.u32 [#allocation7], 4
      %s44 = int_to_ptr.vmem [resolvable:$true] %s43
      %46 = dma.hbm_to_vmem [thread:$0]  %s2, 64, %s44, [#allocation6]
    $region13: #{tpu_custom_call.1} parent=1 // pred_fallthru
      _
    // Predicated region
    $region14: #{tpu_custom_call.1} parent=1 // pred_check
      _
    $region15: #{tpu_custom_call.1} parent=1 // pred_check_branch
      %48 = sbr.rel (0) target = $region17
    $region16: #{tpu_custom_call.1} parent=1 // pred_region
      %s50 = ssub.s32 64, 64
      %51 = vsyncadd [#allocation9], %s50
      %s53 = sshll.u32 [#allocation8], 4
      %s54 = int_to_ptr.vmem [resolvable:$true] %s53
      %56 = dma.hbm_to_vmem [thread:$0]  %s3, 64, %s54, [#allocation9]
    $region17: #{tpu_custom_call.1} parent=1 // pred_fallthru
      _
    // Predicated region
    $region18: #{tpu_custom_call.1} parent=1 // pred_check
      _
    $region19: #{tpu_custom_call.1} parent=1 // pred_check_branch
      %58 = sbr.rel (0) target = $region21
    $region20: #{tpu_custom_call.1} parent=1 // pred_region
      %s60 = ssub.s32 64, 64
      %61 = vsyncadd [#allocation9], %s60
      %s63 = sshll.u32 [#allocation10], 4
      %s64 = int_to_ptr.vmem [resolvable:$true] %s63
      %66 = dma.hbm_to_vmem [thread:$0]  %s4, 64, %s64, [#allocation9]
    $region21: #{tpu_custom_call.1} parent=1 // pred_fallthru
      _
    // Predicated region
    $region22: #{tpu_custom_call.1} parent=1 // pred_check
      _
    $region23: #{tpu_custom_call.1} parent=1 // pred_check_branch
      %68 = sbr.rel (0) target = $region25
    $region24: #{tpu_custom_call.1} parent=1 // pred_region
      _
    $region25: #{tpu_custom_call.1} parent=1 // pred_fallthru
      _
    // Predicated region
    $region26: #{tpu_custom_call.1} parent=1 // pred_check
      _
    $region27: #{tpu_custom_call.1} parent=1 // pred_check_branch
      %70 = sbr.rel (0) target = $region29
    $region28: #{tpu_custom_call.1} parent=1 // pred_region
      %71 = dma.done [#allocation3], 512
    $region29: #{tpu_custom_call.1} parent=1 // pred_fallthru
      _
    // Predicated region
    $region30: #{tpu_custom_call.1} parent=1 // pred_check
      _
    $region31: #{tpu_custom_call.1} parent=1 // pred_check_branch
      %73 = sbr.rel (0) target = $region33
    $region32: #{tpu_custom_call.1} parent=1 // pred_region
      %74 = dma.done [#allocation6], 256
    $region33: #{tpu_custom_call.1} parent=1 // pred_fallthru
      _
    // Predicated region
    $region34: #{tpu_custom_call.1} parent=1 // pred_check
      _
    $region35: #{tpu_custom_call.1} parent=1 // pred_check_branch
      %76 = sbr.rel (0) target = $region37
    $region36: #{tpu_custom_call.1} parent=1 // pred_region
      %77 = dma.done [#allocation6], 64
    $region37: #{tpu_custom_call.1} parent=1 // pred_fallthru
      _
    // Predicated region
    $region38: #{tpu_custom_call.1} parent=1 // pred_check
      _
    $region39: #{tpu_custom_call.1} parent=1 // pred_check_branch
      %79 = sbr.rel (0) target = $region41
    $region40: #{tpu_custom_call.1} parent=1 // pred_region
      %80 = dma.done [#allocation9], 64
    $region41: #{tpu_custom_call.1} parent=1 // pred_fallthru
      _
    // Predicated region
    $region42: #{tpu_custom_call.1} parent=1 // pred_check
      _
    $region43: #{tpu_custom_call.1} parent=1 // pred_check_branch
      %82 = sbr.rel (0) target = $region45
    $region44: #{tpu_custom_call.1} parent=1 // pred_region
      %83 = dma.done [#allocation9], 64
    $region45: #{tpu_custom_call.1} parent=1 // pred_fallthru
      _
    %v87 = vlaneseq
    %v88 = vand.u32 %v87, 127
    %v89 = vadd.s32 %v88, 128
    %v90 = vadd.s32 %v88, 256
    %v91 = vadd.s32 %v88, 384
    %vm92 = vcmp.lt.s32.totalorder %v88, 0
    %v93 = vsub.s32 0, %v88
    %v94 = vsel %vm92, %v93, %v88
    %v95 = vshrl.u32 %v94, 4
    %v96 = vand.u32 %v94, 15
    %v97 = vsub.s32 0, %v96
    %v98 = vsel %vm92, %v97, %v96
    %vm99 = vcmp.lt.s32.totalorder %v89, 0
    %v100 = vsub.s32 0, %v89
    %v101 = vsel %vm99, %v100, %v89
    %v102 = vshrl.u32 %v101, 4
    %v103 = vand.u32 %v101, 15
    %v104 = vsub.s32 0, %v103
    %v105 = vsel %vm99, %v104, %v103
    %vm106 = vcmp.lt.s32.totalorder %v90, 0
    %v107 = vsub.s32 0, %v90
    %v108 = vsel %vm106, %v107, %v90
    %v109 = vshrl.u32 %v108, 4
    %v110 = vand.u32 %v108, 15
    %v111 = vsub.s32 0, %v110
    %v112 = vsel %vm106, %v111, %v110
    %vm113 = vcmp.lt.s32.totalorder %v91, 0
    %v114 = vsub.s32 0, %v91
    %v115 = vsel %vm113, %v114, %v91
    %v116 = vshrl.u32 %v115, 4
    %v117 = vand.u32 %v115, 15
    %v118 = vsub.s32 0, %v117
    %v119 = vsel %vm113, %v118, %v117
    %vm120 = vcmp.ne.s32.totalorder %v98, 0
    %vm121 = vcmp.ne.s32.totalorder %v105, 0
    %vm122 = vcmp.ne.s32.totalorder %v112, 0
    %vm123 = vcmp.ne.s32.totalorder %v119, 0
    %vm124 = vcmp.lt.s32.totalorder %v98, 0
    %vm125 = vcmp.lt.s32.totalorder %v105, 0
    %vm126 = vcmp.lt.s32.totalorder %v112, 0
    %vm127 = vcmp.lt.s32.totalorder %v119, 0
    %vm128 = vmand %vm124, %vm120
    %vm129 = vmand %vm125, %vm121
    %vm130 = vmand %vm126, %vm122
    %vm131 = vmand %vm127, %vm123
    %v132 = vadd.s32 %v98, 16
    %v133 = vadd.s32 %v105, 16
    %v134 = vadd.s32 %v112, 16
    %v135 = vadd.s32 %v119, 16
    %v136 = vsel %vm128, %v132, %v98
    %v137 = vsel %vm129, %v133, %v105
    %v138 = vsel %vm130, %v134, %v112
    %v139 = vsel %vm131, %v135, %v119
    %vm140 = vcmp.lt.s32.totalorder %v136, 1
    %vm141 = vcmp.lt.s32.totalorder %v137, 1
    %vm142 = vcmp.lt.s32.totalorder %v138, 1
    %vm143 = vcmp.lt.s32.totalorder %v139, 1
    %vm144 = vcmp.ge.s32.totalorder %v136, 15
    %vm145 = vcmp.ge.s32.totalorder %v137, 15
    %vm146 = vcmp.ge.s32.totalorder %v138, 15
    %vm147 = vcmp.ge.s32.totalorder %v139, 15
    %vm148 = vcmp.lt.s32.totalorder %v88, 0
    %v149 = vsub.s32 0, %v88
    %v150 = vsel %vm148, %v149, %v88
    %v151 = vshrl.u32 %v150, 8
    %v152 = vand.u32 %v150, 255
    %v153 = vsub.s32 0, %v152
    %v154 = vsel %vm148, %v153, %v152
    %vm155 = vcmp.lt.s32.totalorder %v89, 0
    %v156 = vsub.s32 0, %v89
    %v157 = vsel %vm155, %v156, %v89
    %v158 = vshrl.u32 %v157, 8
    %v159 = vand.u32 %v157, 255
    %v160 = vsub.s32 0, %v159
    %v161 = vsel %vm155, %v160, %v159
    %vm162 = vcmp.lt.s32.totalorder %v90, 0
    %v163 = vsub.s32 0, %v90
    %v164 = vsel %vm162, %v163, %v90
    %v165 = vshrl.u32 %v164, 8
    %v166 = vand.u32 %v164, 255
    %v167 = vsub.s32 0, %v166
    %v168 = vsel %vm162, %v167, %v166
    %vm169 = vcmp.lt.s32.totalorder %v91, 0
    %v170 = vsub.s32 0, %v91
    %v171 = vsel %vm169, %v170, %v91
    %v172 = vshrl.u32 %v171, 8
    %v173 = vand.u32 %v171, 255
    %v174 = vsub.s32 0, %v173
    %v175 = vsel %vm169, %v174, %v173
    %vm176 = vcmp.ne.s32.totalorder %v154, 0
    %vm177 = vcmp.ne.s32.totalorder %v161, 0
    %vm178 = vcmp.ne.s32.totalorder %v168, 0
    %vm179 = vcmp.ne.s32.totalorder %v175, 0
    %vm180 = vcmp.lt.s32.totalorder %v154, 0
    %vm181 = vcmp.lt.s32.totalorder %v161, 0
    %vm182 = vcmp.lt.s32.totalorder %v168, 0
    %vm183 = vcmp.lt.s32.totalorder %v175, 0
    %vm184 = vmand %vm180, %vm176
    %vm185 = vmand %vm181, %vm177
    %vm186 = vmand %vm182, %vm178
    %vm187 = vmand %vm183, %vm179
    %v188 = vadd.s32 %v154, 256
    %v189 = vadd.s32 %v161, 256
    %v190 = vadd.s32 %v168, 256
    %v191 = vadd.s32 %v175, 256
    %v192 = vsel %vm184, %v188, %v154
    %v193 = vsel %vm185, %v189, %v161
    %v194 = vsel %vm186, %v190, %v168
    %v195 = vsel %vm187, %v191, %v175
    %vm196 = vcmp.lt.s32.totalorder %v192, 16
    %vm197 = vcmp.lt.s32.totalorder %v193, 16
    %vm198 = vcmp.lt.s32.totalorder %v194, 16
    %vm199 = vcmp.lt.s32.totalorder %v195, 16
    %vm200 = vcmp.ge.s32.totalorder %v192, 240
    %vm201 = vcmp.ge.s32.totalorder %v193, 240
    %vm202 = vcmp.ge.s32.totalorder %v194, 240
    %vm203 = vcmp.ge.s32.totalorder %v195, 240
    %v204 = vld [vmem:[#allocation5] sm:$0xff]
    %v205 = vld [vmem:[#allocation5 + $0x8] sm:$0xff]
    %v206 = vld [vmem:[#allocation2] sm:$0xff]
    %v207 = vld [vmem:[#allocation2 + $0x8] sm:$0xff]
    %v208 = vld [vmem:[#allocation2 + $0x10] sm:$0xff]
    %v209 = vld [vmem:[#allocation2 + $0x18] sm:$0xff]
    %v210 = vld [vmem:[#allocation7] sm:$0xf]
    %v211 = vld [vmem:[#allocation8] sm:$0xf]
    %v212 = vadd.f32 %v206, %v207
    %v213 = vadd.f32 %v212, %v208
    %v214 = vadd.f32 %v213, %v209
    %215 = vadd.xlane.f32.xlu0 %v214
    %v216 = vpop.xlane.xlu0 %215
    %v217 = vmul.f32 %v206, %v206
    %v218 = vmul.f32 %v207, %v207
    %v219 = vmul.f32 %v208, %v208
    %v220 = vmul.f32 %v209, %v209
    %v221 = vadd.f32 %v217, %v218
    %v222 = vadd.f32 %v221, %v219
    %v223 = vadd.f32 %v222, %v220
    %224 = vadd.xlane.f32.xlu0 %v223
    %v225 = vpop.xlane.xlu0 %224
    %v226 = vmul.f32 %v216, 0.001953125
    %v227 = vmul.f32 %v225, 0.001953125
    %v228 = vmul.f32 %v226, %v226
    %v229 = vsub.f32 %v227, %v228
    %v230 = vsub.f32 %v206, %v226
    %v231 = vsub.f32 %v207, %v226
    %v232 = vsub.f32 %v208, %v226
    %v233 = vsub.f32 %v209, %v226
    %v234 = vadd.f32 %v229, 1e-05
    %v235 = vrsqrt.pop %v234
    %v236 = vmul.f32 %v230, %v235
    %v237 = vmul.f32 %v231, %v235
    %v238 = vmul.f32 %v232, %v235
    %v239 = vmul.f32 %v233, %v235
    %241 = vset.pattern.permute.xlu0 0
    %242 = vperm.xlu0 %241, %v204
    %v243 = vpop.permute.xlu0 %242
    %v245 = vmul.f32 %v236, %v243
    %v246 = vmul.f32 %v237, %v243
    %v247 = vmul.f32 %v238, %v243
    %v248 = vmul.f32 %v239, %v243
    %249 = vset.pattern.permute.xlu0 1
    %250 = vperm.xlu0 %249, %v204
    %v251 = vpop.permute.xlu0 %250
    %v253 = vadd.f32 %v245, %v251
    %v254 = vadd.f32 %v246, %v251
    %v255 = vadd.f32 %v247, %v251
    %v256 = vadd.f32 %v248, %v251
    %v257 = vmax.f32 %v253, 0.0
    %v258 = vmax.f32 %v254, 0.0
    %v259 = vmax.f32 %v255, 0.0
    %v260 = vmax.f32 %v256, 0.0
    %v261 = vpack.c.bf16 %v257, %v257
    %v262 = vpack.c.bf16 %v258, %v258
    %v263 = vpack.c.bf16 %v259, %v259
    %v264 = vpack.c.bf16 %v260, %v260
    %266 = vrot.lane.b32.xlu0 %v264, 1
    %v267 = vpop.permute.xlu0 %266
    %271 = vrot.lane.b32.xlu0 %v261, 1
    %v272 = vpop.permute.xlu0 %271
    %273 = vrot.lane.b32.xlu0 %v262, 1
    %v274 = vpop.permute.xlu0 %273
    %275 = vrot.lane.b32.xlu0 %v263, 1
    %v276 = vpop.permute.xlu0 %275
    %vm277 = vcmask 7168
    %v278 = vsel %vm277, %v272, %v274
    %v279 = vsel %vm277, %v274, %v276
    %v280 = vsel %vm277, %v276, %v267
    %vm284 = vcmask 7168
    %v287 = vsel %vm284, %v267, %v272
    %289 = vrot.lane.b32.xlu0 %v261, 113
    %v290 = vpop.permute.xlu0 %289
    %291 = vrot.lane.b32.xlu0 %v262, 113
    %v292 = vpop.permute.xlu0 %291
    %293 = vrot.lane.b32.xlu0 %v263, 113
    %v294 = vpop.permute.xlu0 %293
    %295 = vrot.lane.b32.xlu0 %v264, 113
    %v296 = vpop.permute.xlu0 %295
    %vm297 = vcmask 924672
    %v298 = vsel %vm297, %v290, %v292
    %v299 = vsel %vm297, %v292, %v294
    %v300 = vsel %vm297, %v294, %v296
    %vm304 = vcmask 924672
    %v307 = vsel %vm304, %v296, %v290
    %v309 = vsel %vm140, 1, 0
    %v310 = vsel %vm141, 1, 0
    %v311 = vsel %vm142, 1, 0
    %v312 = vsel %vm143, 1, 0
    %vm313 = vcmp.eq.s32.totalorder %v309, 1
    %vm314 = vcmp.eq.s32.totalorder %v310, 1
    %vm315 = vcmp.eq.s32.totalorder %v311, 1
    %vm316 = vcmp.eq.s32.totalorder %v312, 1
    %vm317 = vmpackc.low %vm314, %vm313
    %vm318 = vmpackc.low %vm316, %vm315
    %v319 = vsel %vm317, 65537, 0
    %v320 = vsel %vm318, 65537, 0
    %v321 = vlaneseq
    %v322 = vshrl.u32 %v321, 7
    %v323 = vsub.s32 0, %v322
    %v324 = vrot.slane %v319, %v323
    %v325 = vlaneseq
    %v326 = vshrl.u32 %v325, 7
    %v327 = vsub.s32 4, %v326
    %v328 = vrot.slane %v319, %v327
    %v329 = vlaneseq
    %v330 = vshrl.u32 %v329, 7
    %v331 = vsub.s32 0, %v330
    %v332 = vrot.slane %v320, %v331
    %v333 = vlaneseq
    %v334 = vshrl.u32 %v333, 7
    %v335 = vsub.s32 4, %v334
    %v336 = vrot.slane %v320, %v335
    %vm337 = vcmp.ne.s16.totalorder %v324, 0
    %vm338 = vcmp.ne.s16.totalorder %v328, 0
    %vm339 = vcmp.ne.s16.totalorder %v332, 0
    %vm340 = vcmp.ne.s16.totalorder %v336, 0
    %v341 = vsel %vm337, %v298, %v287
    %v342 = vsel %vm338, %v299, %v278
    %v343 = vsel %vm339, %v300, %v279
    %v344 = vsel %vm340, %v307, %v280
    %345 = vrot.lane.b32.xlu0 %v261, 127
    %v346 = vpop.permute.xlu0 %345
    %347 = vrot.lane.b32.xlu0 %v262, 127
    %v348 = vpop.permute.xlu0 %347
    %349 = vrot.lane.b32.xlu0 %v263, 127
    %v350 = vpop.permute.xlu0 %349
    %351 = vrot.lane.b32.xlu0 %v264, 127
    %v352 = vpop.permute.xlu0 %351
    %vm353 = vcmask 1039360
    %v354 = vsel %vm353, %v346, %v348
    %v355 = vsel %vm353, %v348, %v350
    %v356 = vsel %vm353, %v350, %v352
    %vm360 = vcmask 1039360
    %v363 = vsel %vm360, %v352, %v346
    %365 = vrot.lane.b32.xlu0 %v264, 15
    %v366 = vpop.permute.xlu0 %365
    %367 = vrot.lane.b32.xlu0 %v261, 15
    %v368 = vpop.permute.xlu0 %367
    %369 = vrot.lane.b32.xlu0 %v262, 15
    %v370 = vpop.permute.xlu0 %369
    %371 = vrot.lane.b32.xlu0 %v263, 15
    %v372 = vpop.permute.xlu0 %371
    %vm373 = vcmask 121856
    %v374 = vsel %vm373, %v368, %v370
    %v375 = vsel %vm373, %v370, %v372
    %v376 = vsel %vm373, %v372, %v366
    %vm380 = vcmask 121856
    %v383 = vsel %vm380, %v366, %v368
    %v385 = vsel %vm144, 1, 0
    %v386 = vsel %vm145, 1, 0
    %v387 = vsel %vm146, 1, 0
    %v388 = vsel %vm147, 1, 0
    %vm389 = vcmp.eq.s32.totalorder %v385, 1
    %vm390 = vcmp.eq.s32.totalorder %v386, 1
    %vm391 = vcmp.eq.s32.totalorder %v387, 1
    %vm392 = vcmp.eq.s32.totalorder %v388, 1
    %vm393 = vmpackc.low %vm390, %vm389
    %vm394 = vmpackc.low %vm392, %vm391
    %v395 = vsel %vm393, 65537, 0
    %v396 = vsel %vm394, 65537, 0
    %v397 = vlaneseq
    %v398 = vshrl.u32 %v397, 7
    %v399 = vsub.s32 0, %v398
    %v400 = vrot.slane %v395, %v399
    %v401 = vlaneseq
    %v402 = vshrl.u32 %v401, 7
    %v403 = vsub.s32 4, %v402
    %v404 = vrot.slane %v395, %v403
    %v405 = vlaneseq
    %v406 = vshrl.u32 %v405, 7
    %v407 = vsub.s32 0, %v406
    %v408 = vrot.slane %v396, %v407
    %v409 = vlaneseq
    %v410 = vshrl.u32 %v409, 7
    %v411 = vsub.s32 4, %v410
    %v412 = vrot.slane %v396, %v411
    %vm413 = vcmp.ne.s16.totalorder %v400, 0
    %vm414 = vcmp.ne.s16.totalorder %v404, 0
    %vm415 = vcmp.ne.s16.totalorder %v408, 0
    %vm416 = vcmp.ne.s16.totalorder %v412, 0
    %v417 = vsel %vm413, %v383, %v354
    %v418 = vsel %vm414, %v374, %v355
    %v419 = vsel %vm415, %v375, %v356
    %v420 = vsel %vm416, %v376, %v363
    %v421 = vrot.slane %v261, 4
    %v422 = vrot.slane %v262, 4
    %v423 = vrot.slane %v263, 4
    %v424 = vrot.slane %v264, 4
    %vm425 = vcmask 1043456
    %v428 = vsel %vm425, %v341, %v421
    %v431 = vsel %vm425, %v342, %v422
    %v434 = vsel %vm425, %v343, %v423
    %v437 = vsel %vm425, %v344, %v424
    %440 = vrot.lane.b32.xlu0 %v437, 16
    %v441 = vpop.permute.xlu0 %440
    %442 = vrot.lane.b32.xlu0 %v420, 16
    %v443 = vpop.permute.xlu0 %442
    %450 = vrot.lane.b32.xlu0 %v428, 16
    %v451 = vpop.permute.xlu0 %450
    %452 = vrot.lane.b32.xlu0 %v431, 16
    %v453 = vpop.permute.xlu0 %452
    %454 = vrot.lane.b32.xlu0 %v434, 16
    %v455 = vpop.permute.xlu0 %454
    %456 = vrot.lane.b32.xlu0 %v417, 16
    %v457 = vpop.permute.xlu0 %456
    %458 = vrot.lane.b32.xlu0 %v418, 16
    %v459 = vpop.permute.xlu0 %458
    %460 = vrot.lane.b32.xlu0 %v419, 16
    %v461 = vpop.permute.xlu0 %460
    %vm462 = vcmask 130048
    %v463 = vsel %vm462, %v451, %v453
    %v464 = vsel %vm462, %v453, %v455
    %v465 = vsel %vm462, %v455, %v441
    %v466 = vsel %vm462, %v457, %v459
    %v467 = vsel %vm462, %v459, %v461
    %v468 = vsel %vm462, %v461, %v443
    %vm475 = vcmask 130048
    %v478 = vsel %vm475, %v441, %v451
    %v482 = vsel %vm475, %v443, %v457
    %v484 = vsel %vm196, 1, 0
    %v485 = vsel %vm197, 1, 0
    %v486 = vsel %vm198, 1, 0
    %v487 = vsel %vm199, 1, 0
    %vm488 = vcmp.eq.s32.totalorder %v484, 1
    %vm489 = vcmp.eq.s32.totalorder %v485, 1
    %vm490 = vcmp.eq.s32.totalorder %v486, 1
    %vm491 = vcmp.eq.s32.totalorder %v487, 1
    %vm492 = vmpackc.low %vm489, %vm488
    %vm493 = vmpackc.low %vm491, %vm490
    %v494 = vsel %vm492, 65537, 0
    %v495 = vsel %vm493, 65537, 0
    %v496 = vlaneseq
    %v497 = vshrl.u32 %v496, 7
    %v498 = vsub.s32 0, %v497
    %v499 = vrot.slane %v494, %v498
    %v500 = vlaneseq
    %v501 = vshrl.u32 %v500, 7
    %v502 = vsub.s32 4, %v501
    %v503 = vrot.slane %v494, %v502
    %v504 = vlaneseq
    %v505 = vshrl.u32 %v504, 7
    %v506 = vsub.s32 0, %v505
    %v507 = vrot.slane %v495, %v506
    %v508 = vlaneseq
    %v509 = vshrl.u32 %v508, 7
    %v510 = vsub.s32 4, %v509
    %v511 = vrot.slane %v495, %v510
    %vm512 = vcmp.ne.s16.totalorder %v499, 0
    %vm513 = vcmp.ne.s16.totalorder %v503, 0
    %vm514 = vcmp.ne.s16.totalorder %v507, 0
    %vm515 = vcmp.ne.s16.totalorder %v511, 0
    %v516 = vsel %vm512, %v464, %v478
    %v517 = vsel %vm513, %v465, %v463
    %v518 = vsel %vm514, %v478, %v464
    %v519 = vsel %vm515, %v463, %v465
    %v520 = vsel %vm512, %v467, %v482
    %v521 = vsel %vm513, %v468, %v466
    %v522 = vsel %vm514, %v482, %v467
    %v523 = vsel %vm515, %v466, %v468
    %524 = vrot.lane.b32.xlu0 %v428, 112
    %v525 = vpop.permute.xlu0 %524
    %526 = vrot.lane.b32.xlu0 %v431, 112
    %v527 = vpop.permute.xlu0 %526
    %528 = vrot.lane.b32.xlu0 %v434, 112
    %v529 = vpop.permute.xlu0 %528
    %530 = vrot.lane.b32.xlu0 %v437, 112
    %v531 = vpop.permute.xlu0 %530
    %532 = vrot.lane.b32.xlu0 %v417, 112
    %v533 = vpop.permute.xlu0 %532
    %534 = vrot.lane.b32.xlu0 %v418, 112
    %v535 = vpop.permute.xlu0 %534
    %536 = vrot.lane.b32.xlu0 %v419, 112
    %v537 = vpop.permute.xlu0 %536
    %538 = vrot.lane.b32.xlu0 %v420, 112
    %v539 = vpop.permute.xlu0 %538
    %vm540 = vcmask 916480
    %v541 = vsel %vm540, %v525, %v527
    %v542 = vsel %vm540, %v527, %v529
    %v543 = vsel %vm540, %v529, %v531
    %v544 = vsel %vm540, %v533, %v535
    %v545 = vsel %vm540, %v535, %v537
    %v546 = vsel %vm540, %v537, %v539
    %vm553 = vcmask 916480
    %v556 = vsel %vm553, %v531, %v525
    %v560 = vsel %vm553, %v539, %v533
    %v562 = vsel %vm200, 1, 0
    %v563 = vsel %vm201, 1, 0
    %v564 = vsel %vm202, 1, 0
    %v565 = vsel %vm203, 1, 0
    %vm566 = vcmp.eq.s32.totalorder %v562, 1
    %vm567 = vcmp.eq.s32.totalorder %v563, 1
    %vm568 = vcmp.eq.s32.totalorder %v564, 1
    %vm569 = vcmp.eq.s32.totalorder %v565, 1
    %vm570 = vmpackc.low %vm567, %vm566
    %vm571 = vmpackc.low %vm569, %vm568
    %v572 = vsel %vm570, 65537, 0
    %v573 = vsel %vm571, 65537, 0
    %v574 = vlaneseq
    %v575 = vshrl.u32 %v574, 7
    %v576 = vsub.s32 0, %v575
    %v577 = vrot.slane %v572, %v576
    %v578 = vlaneseq
    %v579 = vshrl.u32 %v578, 7
    %v580 = vsub.s32 4, %v579
    %v581 = vrot.slane %v572, %v580
    %v582 = vlaneseq
    %v583 = vshrl.u32 %v582, 7
    %v584 = vsub.s32 0, %v583
    %v585 = vrot.slane %v573, %v584
    %v586 = vlaneseq
    %v587 = vshrl.u32 %v586, 7
    %v588 = vsub.s32 4, %v587
    %v589 = vrot.slane %v573, %v588
    %vm590 = vcmp.ne.s16.totalorder %v577, 0
    %vm591 = vcmp.ne.s16.totalorder %v581, 0
    %vm592 = vcmp.ne.s16.totalorder %v585, 0
    %vm593 = vcmp.ne.s16.totalorder %v589, 0
    %v594 = vsel %vm590, %v543, %v541
    %v595 = vsel %vm591, %v556, %v542
    %v596 = vsel %vm592, %v541, %v543
    %v597 = vsel %vm593, %v542, %v556
    %v598 = vsel %vm590, %v546, %v544
    %v599 = vsel %vm591, %v560, %v545
    %v600 = vsel %vm592, %v544, %v546
    %v601 = vsel %vm593, %v545, %v560
    %vm602 = vcmask 1043456
    %v603 = vrot.slane %v428, 4
    %v604 = vrot.slane %v431, 4
    %v605 = vrot.slane %v434, 4
    %v606 = vrot.slane %v437, 4
    %v607 = vrot.slane %v417, 4
    %v608 = vsel %vm602, %v603, %v607
    %v609 = vrot.slane %v418, 4
    %v610 = vsel %vm602, %v604, %v609
    %v611 = vrot.slane %v419, 4
    %v612 = vsel %vm602, %v605, %v611
    %v613 = vrot.slane %v420, 4
    %v614 = vsel %vm602, %v606, %v613
    %v621 = vsel %vm425, %v520, %v603
    %v625 = vsel %vm425, %v521, %v604
    %v629 = vsel %vm425, %v522, %v605
    %v633 = vsel %vm425, %v523, %v606
    %635 = vset.pattern.permute.xlu0 2
    %636 = vperm.xlu0 %635, %v204
    %v637 = vpop.permute.xlu0 %636
    %vm639 = vcmask 588800
    %v641 = vsel %vm639, %v210, 0
    %v644 = vsel %vm425, %v598, 0
    %v647 = vsel %vm425, %v599, 0
    %v650 = vsel %vm425, %v600, 0
    %v653 = vsel %vm425, %v601, 0
    %655 = vmatprep.subr.bf16.mxu0 0
    %656 = vmatpush1.bf16.msra.mxu0 0
    %657 = vmatprep.subr.bf16.mxu0 0
    %658 = vmatpush1.bf16.msra.mxu0 0
    %659 = vmatprep.subr.bf16.mxu0 0
    %660 = vmatpush1.bf16.msra.mxu0 0
    %661 = vmatprep.subr.bf16.mxu0 %v647
    %662 = vmatpush1.bf16.msra.mxu0 %v644
    %663 = vmatprep.subr.bf16.mxu0 %v595
    %664 = vmatpush1.bf16.msra.mxu0 %v594
    %665 = vmatprep.subr.bf16.mxu0 %v610
    %666 = vmatpush1.bf16.msra.mxu0 %v608
    %667 = vmatprep.subr.bf16.mxu0 %v625
    %668 = vmatpush1.bf16.msra.mxu0 %v621
    %669 = vmatprep.subr.bf16.mxu0 %v517
    %670 = vmatpush1.bf16.msra.mxu0 %v516
    %671 = vmatprep.subr.bf16.mxu0 0
    %672 = vmatpush2.bf16.msra.mxu0 0
    %673 = vmatprep.subr.bf16.mxu0 0
    %674 = vmatpush2.bf16.msra.mxu0 0
    %675 = vmatprep.subr.bf16.mxu0 0
    %676 = vmatpush2.bf16.msra.mxu0 0
    %677 = vmatprep.subr.bf16.mxu0 0
    %678 = vmatpush2.bf16.msra.mxu0 0
    %679 = vmatprep.subr.bf16.mxu0 0
    %680 = vmatpush2.bf16.msra.mxu0 0
    %681 = vmatprep.subr.bf16.mxu0 0
    %682 = vmatpush2.bf16.msra.mxu0 0
    %683 = vmatprep.subr.bf16.mxu0 0
    %684 = vmatpush2.bf16.msra.mxu0 0
    %685 = vmatprep.subr.bf16.mxu0 0
    %686 = vmatpush2.bf16.msra.mxu0 0
    %687 = vmatprep.mubr.bf16.mxu0 0
    %688 = vmatmul.mubr.bf16.gmra.mxu0 %v641
    %v689 = vpop.f32.mrf.mxu0
    %v690 = vadd.f32 %v637, %v689
    %v691 = vpop.f32.mrf.mxu0
    %v692 = vadd.f32 %v637, %v691
    %v693 = vpop.f32.mrf.mxu0
    %v694 = vpop.f32.mrf.mxu0
    %695 = vdwg.mxu0
    %696 = vmatprep.subr.bf16.mxu0 0
    %697 = vmatpush1.bf16.msra.mxu0 0
    %698 = vmatprep.subr.bf16.mxu0 0
    %699 = vmatpush1.bf16.msra.mxu0 0
    %700 = vmatprep.subr.bf16.mxu0 0
    %701 = vmatpush1.bf16.msra.mxu0 0
    %702 = vmatprep.subr.bf16.mxu0 %v653
    %703 = vmatpush1.bf16.msra.mxu0 %v650
    %704 = vmatprep.subr.bf16.mxu0 %v597
    %705 = vmatpush1.bf16.msra.mxu0 %v596
    %706 = vmatprep.subr.bf16.mxu0 %v614
    %707 = vmatpush1.bf16.msra.mxu0 %v612
    %708 = vmatprep.subr.bf16.mxu0 %v633
    %709 = vmatpush1.bf16.msra.mxu0 %v629
    %710 = vmatprep.subr.bf16.mxu0 %v519
    %711 = vmatpush1.bf16.msra.mxu0 %v518
    %712 = vmatprep.subr.bf16.mxu0 0
    %713 = vmatpush2.bf16.msra.mxu0 0
    %714 = vmatprep.subr.bf16.mxu0 0
    %715 = vmatpush2.bf16.msra.mxu0 0
    %716 = vmatprep.subr.bf16.mxu0 0
    %717 = vmatpush2.bf16.msra.mxu0 0
    %718 = vmatprep.subr.bf16.mxu0 0
    %719 = vmatpush2.bf16.msra.mxu0 0
    %720 = vmatprep.subr.bf16.mxu0 0
    %721 = vmatpush2.bf16.msra.mxu0 0
    %722 = vmatprep.subr.bf16.mxu0 0
    %723 = vmatpush2.bf16.msra.mxu0 0
    %724 = vmatprep.subr.bf16.mxu0 0
    %725 = vmatpush2.bf16.msra.mxu0 0
    %726 = vmatprep.subr.bf16.mxu0 0
    %727 = vmatpush2.bf16.msra.mxu0 0
    %728 = vmatprep.mubr.bf16.mxu0 0
    %729 = vmatmul.mubr.bf16.gmra.mxu0 %v641
    %v730 = vpop.f32.mrf.mxu0
    %v731 = vadd.f32 %v637, %v730
    %v732 = vpop.f32.mrf.mxu0
    %v733 = vadd.f32 %v637, %v732
    %v734 = vpop.f32.mrf.mxu0
    %v735 = vpop.f32.mrf.mxu0
    %736 = vdwg.mxu0
    %v737 = vadd.f32 %v690, %v692
    %v738 = vadd.f32 %v737, %v731
    %v739 = vadd.f32 %v738, %v733
    %740 = vadd.xlane.f32.xlu0 %v739
    %v741 = vpop.xlane.xlu0 %740
    %v742 = vmul.f32 %v690, %v690
    %v743 = vmul.f32 %v692, %v692
    %v744 = vmul.f32 %v731, %v731
    %v745 = vmul.f32 %v733, %v733
    %v746 = vadd.f32 %v742, %v743
    %v747 = vadd.f32 %v746, %v744
    %v748 = vadd.f32 %v747, %v745
    %749 = vadd.xlane.f32.xlu0 %v748
    %v750 = vpop.xlane.xlu0 %749
    %v751 = vmul.f32 %v741, 0.001953125
    %v752 = vmul.f32 %v750, 0.001953125
    %v753 = vmul.f32 %v751, %v751
    %v754 = vsub.f32 %v752, %v753
    %v755 = vsub.f32 %v690, %v751
    %v756 = vsub.f32 %v692, %v751
    %v757 = vsub.f32 %v731, %v751
    %v758 = vsub.f32 %v733, %v751
    %v759 = vadd.f32 %v754, 1e-05
    %v760 = vrsqrt.pop %v759
    %v761 = vmul.f32 %v755, %v760
    %v762 = vmul.f32 %v756, %v760
    %v763 = vmul.f32 %v757, %v760
    %v764 = vmul.f32 %v758, %v760
    %765 = vset.pattern.permute.xlu0 3
    %766 = vperm.xlu0 %765, %v204
    %v767 = vpop.permute.xlu0 %766
    %v769 = vmul.f32 %v761, %v767
    %v770 = vmul.f32 %v762, %v767
    %v771 = vmul.f32 %v763, %v767
    %v772 = vmul.f32 %v764, %v767
    %773 = vset.pattern.permute.xlu0 4
    %774 = vperm.xlu0 %773, %v204
    %v775 = vpop.permute.xlu0 %774
    %v777 = vadd.f32 %v769, %v775
    %v778 = vadd.f32 %v770, %v775
    %v779 = vadd.f32 %v771, %v775
    %v780 = vadd.f32 %v772, %v775
    %v781 = vmax.f32 %v777, 0.0
    %v782 = vmax.f32 %v778, 0.0
    %v783 = vmax.f32 %v779, 0.0
    %v784 = vmax.f32 %v780, 0.0
    %v785 = vpack.c.bf16 %v781, %v781
    %v786 = vpack.c.bf16 %v782, %v782
    %v787 = vpack.c.bf16 %v783, %v783
    %v788 = vpack.c.bf16 %v784, %v784
    %790 = vrot.lane.b32.xlu0 %v788, 1
    %v791 = vpop.permute.xlu0 %790
    %795 = vrot.lane.b32.xlu0 %v785, 1
    %v796 = vpop.permute.xlu0 %795
    %797 = vrot.lane.b32.xlu0 %v786, 1
    %v798 = vpop.permute.xlu0 %797
    %799 = vrot.lane.b32.xlu0 %v787, 1
    %v800 = vpop.permute.xlu0 %799
    %v801 = vsel %vm277, %v796, %v798
    %v802 = vsel %vm277, %v798, %v800
    %v803 = vsel %vm277, %v800, %v791
    %v809 = vsel %vm284, %v791, %v796
    %811 = vrot.lane.b32.xlu0 %v785, 113
    %v812 = vpop.permute.xlu0 %811
    %813 = vrot.lane.b32.xlu0 %v786, 113
    %v814 = vpop.permute.xlu0 %813
    %815 = vrot.lane.b32.xlu0 %v787, 113
    %v816 = vpop.permute.xlu0 %815
    %817 = vrot.lane.b32.xlu0 %v788, 113
    %v818 = vpop.permute.xlu0 %817
    %v819 = vsel %vm297, %v812, %v814
    %v820 = vsel %vm297, %v814, %v816
    %v821 = vsel %vm297, %v816, %v818
    %v827 = vsel %vm304, %v818, %v812
    %v829 = vsel %vm337, %v819, %v809
    %v830 = vsel %vm338, %v820, %v801
    %v831 = vsel %vm339, %v821, %v802
    %v832 = vsel %vm340, %v827, %v803
    %833 = vrot.lane.b32.xlu0 %v785, 127
    %v834 = vpop.permute.xlu0 %833
    %835 = vrot.lane.b32.xlu0 %v786, 127
    %v836 = vpop.permute.xlu0 %835
    %837 = vrot.lane.b32.xlu0 %v787, 127
    %v838 = vpop.permute.xlu0 %837
    %839 = vrot.lane.b32.xlu0 %v788, 127
    %v840 = vpop.permute.xlu0 %839
    %v841 = vsel %vm353, %v834, %v836
    %v842 = vsel %vm353, %v836, %v838
    %v843 = vsel %vm353, %v838, %v840
    %v849 = vsel %vm360, %v840, %v834
    %851 = vrot.lane.b32.xlu0 %v788, 15
    %v852 = vpop.permute.xlu0 %851
    %853 = vrot.lane.b32.xlu0 %v785, 15
    %v854 = vpop.permute.xlu0 %853
    %855 = vrot.lane.b32.xlu0 %v786, 15
    %v856 = vpop.permute.xlu0 %855
    %857 = vrot.lane.b32.xlu0 %v787, 15
    %v858 = vpop.permute.xlu0 %857
    %v859 = vsel %vm373, %v854, %v856
    %v860 = vsel %vm373, %v856, %v858
    %v861 = vsel %vm373, %v858, %v852
    %v867 = vsel %vm380, %v852, %v854
    %v869 = vsel %vm413, %v867, %v841
    %v870 = vsel %vm414, %v859, %v842
    %v871 = vsel %vm415, %v860, %v843
    %v872 = vsel %vm416, %v861, %v849
    %v873 = vrot.slane %v785, 4
    %v874 = vrot.slane %v786, 4
    %v875 = vrot.slane %v787, 4
    %v876 = vrot.slane %v788, 4
    %v879 = vsel %vm425, %v829, %v873
    %v882 = vsel %vm425, %v830, %v874
    %v885 = vsel %vm425, %v831, %v875
    %v888 = vsel %vm425, %v832, %v876
    %891 = vrot.lane.b32.xlu0 %v888, 16
    %v892 = vpop.permute.xlu0 %891
    %893 = vrot.lane.b32.xlu0 %v872, 16
    %v894 = vpop.permute.xlu0 %893
    %901 = vrot.lane.b32.xlu0 %v879, 16
    %v902 = vpop.permute.xlu0 %901
    %903 = vrot.lane.b32.xlu0 %v882, 16
    %v904 = vpop.permute.xlu0 %903
    %905 = vrot.lane.b32.xlu0 %v885, 16
    %v906 = vpop.permute.xlu0 %905
    %907 = vrot.lane.b32.xlu0 %v869, 16
    %v908 = vpop.permute.xlu0 %907
    %909 = vrot.lane.b32.xlu0 %v870, 16
    %v910 = vpop.permute.xlu0 %909
    %911 = vrot.lane.b32.xlu0 %v871, 16
    %v912 = vpop.permute.xlu0 %911
    %v913 = vsel %vm462, %v902, %v904
    %v914 = vsel %vm462, %v904, %v906
    %v915 = vsel %vm462, %v906, %v892
    %v916 = vsel %vm462, %v908, %v910
    %v917 = vsel %vm462, %v910, %v912
    %v918 = vsel %vm462, %v912, %v894
    %v927 = vsel %vm475, %v892, %v902
    %v931 = vsel %vm475, %v894, %v908
    %v933 = vsel %vm512, %v914, %v927
    %v934 = vsel %vm513, %v915, %v913
    %v935 = vsel %vm514, %v927, %v914
    %v936 = vsel %vm515, %v913, %v915
    %v937 = vsel %vm512, %v917, %v931
    %v938 = vsel %vm513, %v918, %v916
    %v939 = vsel %vm514, %v931, %v917
    %v940 = vsel %vm515, %v916, %v918
    %941 = vrot.lane.b32.xlu0 %v879, 112
    %v942 = vpop.permute.xlu0 %941
    %943 = vrot.lane.b32.xlu0 %v882, 112
    %v944 = vpop.permute.xlu0 %943
    %945 = vrot.lane.b32.xlu0 %v885, 112
    %v946 = vpop.permute.xlu0 %945
    %947 = vrot.lane.b32.xlu0 %v888, 112
    %v948 = vpop.permute.xlu0 %947
    %949 = vrot.lane.b32.xlu0 %v869, 112
    %v950 = vpop.permute.xlu0 %949
    %951 = vrot.lane.b32.xlu0 %v870, 112
    %v952 = vpop.permute.xlu0 %951
    %953 = vrot.lane.b32.xlu0 %v871, 112
    %v954 = vpop.permute.xlu0 %953
    %955 = vrot.lane.b32.xlu0 %v872, 112
    %v956 = vpop.permute.xlu0 %955
    %v957 = vsel %vm540, %v942, %v944
    %v958 = vsel %vm540, %v944, %v946
    %v959 = vsel %vm540, %v946, %v948
    %v960 = vsel %vm540, %v950, %v952
    %v961 = vsel %vm540, %v952, %v954
    %v962 = vsel %vm540, %v954, %v956
    %v971 = vsel %vm553, %v948, %v942
    %v975 = vsel %vm553, %v956, %v950
    %v977 = vsel %vm590, %v959, %v957
    %v978 = vsel %vm591, %v971, %v958
    %v979 = vsel %vm592, %v957, %v959
    %v980 = vsel %vm593, %v958, %v971
    %v981 = vsel %vm590, %v962, %v960
    %v982 = vsel %vm591, %v975, %v961
    %v983 = vsel %vm592, %v960, %v962
    %v984 = vsel %vm593, %v961, %v975
    %v985 = vrot.slane %v879, 4
    %v986 = vrot.slane %v882, 4
    %v987 = vrot.slane %v885, 4
    %v988 = vrot.slane %v888, 4
    %v989 = vrot.slane %v869, 4
    %v990 = vsel %vm602, %v985, %v989
    %v991 = vrot.slane %v870, 4
    %v992 = vsel %vm602, %v986, %v991
    %v993 = vrot.slane %v871, 4
    %v994 = vsel %vm602, %v987, %v993
    %v995 = vrot.slane %v872, 4
    %v996 = vsel %vm602, %v988, %v995
    %v1003 = vsel %vm425, %v937, %v985
    %v1007 = vsel %vm425, %v938, %v986
    %v1011 = vsel %vm425, %v939, %v987
    %v1015 = vsel %vm425, %v940, %v988
    %1017 = vset.pattern.permute.xlu0 5
    %1018 = vperm.xlu0 %1017, %v204
    %v1019 = vpop.permute.xlu0 %1018
    %v1022 = vsel %vm639, %v211, 0
    %v1025 = vsel %vm425, %v981, 0
    %v1028 = vsel %vm425, %v982, 0
    %v1031 = vsel %vm425, %v983, 0
    %v1034 = vsel %vm425, %v984, 0
    %1036 = vmatprep.subr.bf16.mxu0 0
    %1037 = vmatpush1.bf16.msra.mxu0 0
    %1038 = vmatprep.subr.bf16.mxu0 0
    %1039 = vmatpush1.bf16.msra.mxu0 0
    %1040 = vmatprep.subr.bf16.mxu0 0
    %1041 = vmatpush1.bf16.msra.mxu0 0
    %1042 = vmatprep.subr.bf16.mxu0 %v1028
    %1043 = vmatpush1.bf16.msra.mxu0 %v1025
    %1044 = vmatprep.subr.bf16.mxu0 %v978
    %1045 = vmatpush1.bf16.msra.mxu0 %v977
    %1046 = vmatprep.subr.bf16.mxu0 %v992
    %1047 = vmatpush1.bf16.msra.mxu0 %v990
    %1048 = vmatprep.subr.bf16.mxu0 %v1007
    %1049 = vmatpush1.bf16.msra.mxu0 %v1003
    %1050 = vmatprep.subr.bf16.mxu0 %v934
    %1051 = vmatpush1.bf16.msra.mxu0 %v933
    %1052 = vmatprep.subr.bf16.mxu0 0
    %1053 = vmatpush2.bf16.msra.mxu0 0
    %1054 = vmatprep.subr.bf16.mxu0 0
    %1055 = vmatpush2.bf16.msra.mxu0 0
    %1056 = vmatprep.subr.bf16.mxu0 0
    %1057 = vmatpush2.bf16.msra.mxu0 0
    %1058 = vmatprep.subr.bf16.mxu0 0
    %1059 = vmatpush2.bf16.msra.mxu0 0
    %1060 = vmatprep.subr.bf16.mxu0 0
    %1061 = vmatpush2.bf16.msra.mxu0 0
    %1062 = vmatprep.subr.bf16.mxu0 0
    %1063 = vmatpush2.bf16.msra.mxu0 0
    %1064 = vmatprep.subr.bf16.mxu0 0
    %1065 = vmatpush2.bf16.msra.mxu0 0
    %1066 = vmatprep.subr.bf16.mxu0 0
    %1067 = vmatpush2.bf16.msra.mxu0 0
    %1068 = vmatprep.mubr.bf16.mxu0 0
    %1069 = vmatmul.mubr.bf16.gmra.mxu0 %v1022
    %v1070 = vpop.f32.mrf.mxu0
    %v1071 = vadd.f32 %v1019, %v1070
    %v1072 = vpop.f32.mrf.mxu0
    %v1073 = vadd.f32 %v1019, %v1072
    %v1074 = vpop.f32.mrf.mxu0
    %v1075 = vpop.f32.mrf.mxu0
    %1076 = vdwg.mxu0
    %1077 = vmatprep.subr.bf16.mxu0 0
    %1078 = vmatpush1.bf16.msra.mxu0 0
    %1079 = vmatprep.subr.bf16.mxu0 0
    %1080 = vmatpush1.bf16.msra.mxu0 0
    %1081 = vmatprep.subr.bf16.mxu0 0
    %1082 = vmatpush1.bf16.msra.mxu0 0
    %1083 = vmatprep.subr.bf16.mxu0 %v1034
    %1084 = vmatpush1.bf16.msra.mxu0 %v1031
    %1085 = vmatprep.subr.bf16.mxu0 %v980
    %1086 = vmatpush1.bf16.msra.mxu0 %v979
    %1087 = vmatprep.subr.bf16.mxu0 %v996
    %1088 = vmatpush1.bf16.msra.mxu0 %v994
    %1089 = vmatprep.subr.bf16.mxu0 %v1015
    %1090 = vmatpush1.bf16.msra.mxu0 %v1011
    %1091 = vmatprep.subr.bf16.mxu0 %v936
    %1092 = vmatpush1.bf16.msra.mxu0 %v935
    %1093 = vmatprep.subr.bf16.mxu0 0
    %1094 = vmatpush2.bf16.msra.mxu0 0
    %1095 = vmatprep.subr.bf16.mxu0 0
    %1096 = vmatpush2.bf16.msra.mxu0 0
    %1097 = vmatprep.subr.bf16.mxu0 0
    %1098 = vmatpush2.bf16.msra.mxu0 0
    %1099 = vmatprep.subr.bf16.mxu0 0
    %1100 = vmatpush2.bf16.msra.mxu0 0
    %1101 = vmatprep.subr.bf16.mxu0 0
    %1102 = vmatpush2.bf16.msra.mxu0 0
    %1103 = vmatprep.subr.bf16.mxu0 0
    %1104 = vmatpush2.bf16.msra.mxu0 0
    %1105 = vmatprep.subr.bf16.mxu0 0
    %1106 = vmatpush2.bf16.msra.mxu0 0
    %1107 = vmatprep.subr.bf16.mxu0 0
    %1108 = vmatpush2.bf16.msra.mxu0 0
    %1109 = vmatprep.mubr.bf16.mxu0 0
    %1110 = vmatmul.mubr.bf16.gmra.mxu0 %v1022
    %v1111 = vpop.f32.mrf.mxu0
    %v1112 = vadd.f32 %v1019, %v1111
    %v1113 = vpop.f32.mrf.mxu0
    %v1114 = vadd.f32 %v1019, %v1113
    %v1115 = vpop.f32.mrf.mxu0
    %v1116 = vpop.f32.mrf.mxu0
    %1117 = vdwg.mxu0
    %v1118 = vadd.f32 %v1071, %v206
    %v1119 = vadd.f32 %v1073, %v207
    %v1120 = vadd.f32 %v1112, %v208
    %v1121 = vadd.f32 %v1114, %v209
    %v1122 = vld [vmem:[#allocation10] sm:$0xf]
    %v1123 = vld [vmem:[%s5] sm:$0xf]
    %v1124 = vld [vmem:[%s5 + $0x4] sm:$0xf]
    %v1125 = vadd.f32 %v1118, %v1119
    %v1126 = vadd.f32 %v1125, %v1120
    %v1127 = vadd.f32 %v1126, %v1121
    %1128 = vadd.xlane.f32.xlu0 %v1127
    %v1129 = vpop.xlane.xlu0 %1128
    %v1130 = vmul.f32 %v1118, %v1118
    %v1131 = vmul.f32 %v1119, %v1119
    %v1132 = vmul.f32 %v1120, %v1120
    %v1133 = vmul.f32 %v1121, %v1121
    %v1134 = vadd.f32 %v1130, %v1131
    %v1135 = vadd.f32 %v1134, %v1132
    %v1136 = vadd.f32 %v1135, %v1133
    %1137 = vadd.xlane.f32.xlu0 %v1136
    %v1138 = vpop.xlane.xlu0 %1137
    %v1139 = vmul.f32 %v1129, 0.001953125
    %v1140 = vmul.f32 %v1138, 0.001953125
    %v1141 = vmul.f32 %v1139, %v1139
    %v1142 = vsub.f32 %v1140, %v1141
    %v1143 = vsub.f32 %v1118, %v1139
    %v1144 = vsub.f32 %v1119, %v1139
    %v1145 = vsub.f32 %v1120, %v1139
    %v1146 = vsub.f32 %v1121, %v1139
    %v1147 = vadd.f32 %v1142, 1e-05
    %v1148 = vrsqrt.pop %v1147
    %v1149 = vmul.f32 %v1143, %v1148
    %v1150 = vmul.f32 %v1144, %v1148
    %v1151 = vmul.f32 %v1145, %v1148
    %v1152 = vmul.f32 %v1146, %v1148
    %1153 = vset.pattern.permute.xlu0 6
    %1154 = vperm.xlu0 %1153, %v204
    %v1155 = vpop.permute.xlu0 %1154
    %v1157 = vmul.f32 %v1149, %v1155
    %v1158 = vmul.f32 %v1150, %v1155
    %v1159 = vmul.f32 %v1151, %v1155
    %v1160 = vmul.f32 %v1152, %v1155
    %1161 = vset.pattern.permute.xlu0 7
    %1162 = vperm.xlu0 %1161, %v204
    %v1163 = vpop.permute.xlu0 %1162
    %v1165 = vadd.f32 %v1157, %v1163
    %v1166 = vadd.f32 %v1158, %v1163
    %v1167 = vadd.f32 %v1159, %v1163
    %v1168 = vadd.f32 %v1160, %v1163
    %v1169 = vmax.f32 %v1165, 0.0
    %v1170 = vmax.f32 %v1166, 0.0
    %v1171 = vmax.f32 %v1167, 0.0
    %v1172 = vmax.f32 %v1168, 0.0
    %v1173 = vpack.c.bf16 %v1169, %v1169
    %v1174 = vpack.c.bf16 %v1170, %v1170
    %v1175 = vpack.c.bf16 %v1171, %v1171
    %v1176 = vpack.c.bf16 %v1172, %v1172
    %1178 = vrot.lane.b32.xlu0 %v1176, 1
    %v1179 = vpop.permute.xlu0 %1178
    %1183 = vrot.lane.b32.xlu0 %v1173, 1
    %v1184 = vpop.permute.xlu0 %1183
    %1185 = vrot.lane.b32.xlu0 %v1174, 1
    %v1186 = vpop.permute.xlu0 %1185
    %1187 = vrot.lane.b32.xlu0 %v1175, 1
    %v1188 = vpop.permute.xlu0 %1187
    %v1189 = vsel %vm277, %v1184, %v1186
    %v1190 = vsel %vm277, %v1186, %v1188
    %v1191 = vsel %vm277, %v1188, %v1179
    %v1197 = vsel %vm284, %v1179, %v1184
    %1199 = vrot.lane.b32.xlu0 %v1173, 113
    %v1200 = vpop.permute.xlu0 %1199
    %1201 = vrot.lane.b32.xlu0 %v1174, 113
    %v1202 = vpop.permute.xlu0 %1201
    %1203 = vrot.lane.b32.xlu0 %v1175, 113
    %v1204 = vpop.permute.xlu0 %1203
    %1205 = vrot.lane.b32.xlu0 %v1176, 113
    %v1206 = vpop.permute.xlu0 %1205
    %v1207 = vsel %vm297, %v1200, %v1202
    %v1208 = vsel %vm297, %v1202, %v1204
    %v1209 = vsel %vm297, %v1204, %v1206
    %v1215 = vsel %vm304, %v1206, %v1200
    %v1217 = vsel %vm337, %v1207, %v1197
    %v1218 = vsel %vm338, %v1208, %v1189
    %v1219 = vsel %vm339, %v1209, %v1190
    %v1220 = vsel %vm340, %v1215, %v1191
    %1221 = vrot.lane.b32.xlu0 %v1173, 127
    %v1222 = vpop.permute.xlu0 %1221
    %1223 = vrot.lane.b32.xlu0 %v1174, 127
    %v1224 = vpop.permute.xlu0 %1223
    %1225 = vrot.lane.b32.xlu0 %v1175, 127
    %v1226 = vpop.permute.xlu0 %1225
    %1227 = vrot.lane.b32.xlu0 %v1176, 127
    %v1228 = vpop.permute.xlu0 %1227
    %v1229 = vsel %vm353, %v1222, %v1224
    %v1230 = vsel %vm353, %v1224, %v1226
    %v1231 = vsel %vm353, %v1226, %v1228
    %v1237 = vsel %vm360, %v1228, %v1222
    %1239 = vrot.lane.b32.xlu0 %v1176, 15
    %v1240 = vpop.permute.xlu0 %1239
    %1241 = vrot.lane.b32.xlu0 %v1173, 15
    %v1242 = vpop.permute.xlu0 %1241
    %1243 = vrot.lane.b32.xlu0 %v1174, 15
    %v1244 = vpop.permute.xlu0 %1243
    %1245 = vrot.lane.b32.xlu0 %v1175, 15
    %v1246 = vpop.permute.xlu0 %1245
    %v1247 = vsel %vm373, %v1242, %v1244
    %v1248 = vsel %vm373, %v1244, %v1246
    %v1249 = vsel %vm373, %v1246, %v1240
    %v1255 = vsel %vm380, %v1240, %v1242
    %v1257 = vsel %vm413, %v1255, %v1229
    %v1258 = vsel %vm414, %v1247, %v1230
    %v1259 = vsel %vm415, %v1248, %v1231
    %v1260 = vsel %vm416, %v1249, %v1237
    %v1261 = vrot.slane %v1173, 4
    %v1262 = vrot.slane %v1174, 4
    %v1263 = vrot.slane %v1175, 4
    %v1264 = vrot.slane %v1176, 4
    %v1267 = vsel %vm425, %v1217, %v1261
    %v1270 = vsel %vm425, %v1218, %v1262
    %v1273 = vsel %vm425, %v1219, %v1263
    %v1276 = vsel %vm425, %v1220, %v1264
    %1279 = vrot.lane.b32.xlu0 %v1276, 16
    %v1280 = vpop.permute.xlu0 %1279
    %1281 = vrot.lane.b32.xlu0 %v1260, 16
    %v1282 = vpop.permute.xlu0 %1281
    %1289 = vrot.lane.b32.xlu0 %v1267, 16
    %v1290 = vpop.permute.xlu0 %1289
    %1291 = vrot.lane.b32.xlu0 %v1270, 16
    %v1292 = vpop.permute.xlu0 %1291
    %1293 = vrot.lane.b32.xlu0 %v1273, 16
    %v1294 = vpop.permute.xlu0 %1293
    %1295 = vrot.lane.b32.xlu0 %v1257, 16
    %v1296 = vpop.permute.xlu0 %1295
    %1297 = vrot.lane.b32.xlu0 %v1258, 16
    %v1298 = vpop.permute.xlu0 %1297
    %1299 = vrot.lane.b32.xlu0 %v1259, 16
    %v1300 = vpop.permute.xlu0 %1299
    %v1301 = vsel %vm462, %v1290, %v1292
    %v1302 = vsel %vm462, %v1292, %v1294
    %v1303 = vsel %vm462, %v1294, %v1280
    %v1304 = vsel %vm462, %v1296, %v1298
    %v1305 = vsel %vm462, %v1298, %v1300
    %v1306 = vsel %vm462, %v1300, %v1282
    %v1315 = vsel %vm475, %v1280, %v1290
    %v1319 = vsel %vm475, %v1282, %v1296
    %v1321 = vsel %vm512, %v1302, %v1315
    %v1322 = vsel %vm513, %v1303, %v1301
    %v1323 = vsel %vm514, %v1315, %v1302
    %v1324 = vsel %vm515, %v1301, %v1303
    %v1325 = vsel %vm512, %v1305, %v1319
    %v1326 = vsel %vm513, %v1306, %v1304
    %v1327 = vsel %vm514, %v1319, %v1305
    %v1328 = vsel %vm515, %v1304, %v1306
    %1329 = vrot.lane.b32.xlu0 %v1267, 112
    %v1330 = vpop.permute.xlu0 %1329
    %1331 = vrot.lane.b32.xlu0 %v1270, 112
    %v1332 = vpop.permute.xlu0 %1331
    %1333 = vrot.lane.b32.xlu0 %v1273, 112
    %v1334 = vpop.permute.xlu0 %1333
    %1335 = vrot.lane.b32.xlu0 %v1276, 112
    %v1336 = vpop.permute.xlu0 %1335
    %1337 = vrot.lane.b32.xlu0 %v1257, 112
    %v1338 = vpop.permute.xlu0 %1337
    %1339 = vrot.lane.b32.xlu0 %v1258, 112
    %v1340 = vpop.permute.xlu0 %1339
    %1341 = vrot.lane.b32.xlu0 %v1259, 112
    %v1342 = vpop.permute.xlu0 %1341
    %1343 = vrot.lane.b32.xlu0 %v1260, 112
    %v1344 = vpop.permute.xlu0 %1343
    %v1345 = vsel %vm540, %v1330, %v1332
    %v1346 = vsel %vm540, %v1332, %v1334
    %v1347 = vsel %vm540, %v1334, %v1336
    %v1348 = vsel %vm540, %v1338, %v1340
    %v1349 = vsel %vm540, %v1340, %v1342
    %v1350 = vsel %vm540, %v1342, %v1344
    %v1359 = vsel %vm553, %v1336, %v1330
    %v1363 = vsel %vm553, %v1344, %v1338
    %v1365 = vsel %vm590, %v1347, %v1345
    %v1366 = vsel %vm591, %v1359, %v1346
    %v1367 = vsel %vm592, %v1345, %v1347
    %v1368 = vsel %vm593, %v1346, %v1359
    %v1369 = vsel %vm590, %v1350, %v1348
    %v1370 = vsel %vm591, %v1363, %v1349
    %v1371 = vsel %vm592, %v1348, %v1350
    %v1372 = vsel %vm593, %v1349, %v1363
    %v1373 = vrot.slane %v1267, 4
    %v1374 = vrot.slane %v1270, 4
    %v1375 = vrot.slane %v1273, 4
    %v1376 = vrot.slane %v1276, 4
    %v1377 = vrot.slane %v1257, 4
    %v1378 = vsel %vm602, %v1373, %v1377
    %v1379 = vrot.slane %v1258, 4
    %v1380 = vsel %vm602, %v1374, %v1379
    %v1381 = vrot.slane %v1259, 4
    %v1382 = vsel %vm602, %v1375, %v1381
    %v1383 = vrot.slane %v1260, 4
    %v1384 = vsel %vm602, %v1376, %v1383
    %v1391 = vsel %vm425, %v1325, %v1373
    %v1395 = vsel %vm425, %v1326, %v1374
    %v1399 = vsel %vm425, %v1327, %v1375
    %v1403 = vsel %vm425, %v1328, %v1376
    %1405 = vset.pattern.permute.xlu0 8
    %1406 = vperm.xlu0 %1405, %v204
    %v1407 = vpop.permute.xlu0 %1406
    %v1410 = vsel %vm639, %v1122, 0
    %v1413 = vsel %vm425, %v1369, 0
    %v1416 = vsel %vm425, %v1370, 0
    %v1419 = vsel %vm425, %v1371, 0
    %v1422 = vsel %vm425, %v1372, 0
    %1424 = vmatprep.subr.bf16.mxu0 0
    %1425 = vmatpush1.bf16.msra.mxu0 0
    %1426 = vmatprep.subr.bf16.mxu0 0
    %1427 = vmatpush1.bf16.msra.mxu0 0
    %1428 = vmatprep.subr.bf16.mxu0 0
    %1429 = vmatpush1.bf16.msra.mxu0 0
    %1430 = vmatprep.subr.bf16.mxu0 %v1416
    %1431 = vmatpush1.bf16.msra.mxu0 %v1413
    %1432 = vmatprep.subr.bf16.mxu0 %v1366
    %1433 = vmatpush1.bf16.msra.mxu0 %v1365
    %1434 = vmatprep.subr.bf16.mxu0 %v1380
    %1435 = vmatpush1.bf16.msra.mxu0 %v1378
    %1436 = vmatprep.subr.bf16.mxu0 %v1395
    %1437 = vmatpush1.bf16.msra.mxu0 %v1391
    %1438 = vmatprep.subr.bf16.mxu0 %v1322
    %1439 = vmatpush1.bf16.msra.mxu0 %v1321
    %1440 = vmatprep.subr.bf16.mxu0 0
    %1441 = vmatpush2.bf16.msra.mxu0 0
    %1442 = vmatprep.subr.bf16.mxu0 0
    %1443 = vmatpush2.bf16.msra.mxu0 0
    %1444 = vmatprep.subr.bf16.mxu0 0
    %1445 = vmatpush2.bf16.msra.mxu0 0
    %1446 = vmatprep.subr.bf16.mxu0 0
    %1447 = vmatpush2.bf16.msra.mxu0 0
    %1448 = vmatprep.subr.bf16.mxu0 0
    %1449 = vmatpush2.bf16.msra.mxu0 0
    %1450 = vmatprep.subr.bf16.mxu0 0
    %1451 = vmatpush2.bf16.msra.mxu0 0
    %1452 = vmatprep.subr.bf16.mxu0 0
    %1453 = vmatpush2.bf16.msra.mxu0 0
    %1454 = vmatprep.subr.bf16.mxu0 0
    %1455 = vmatpush2.bf16.msra.mxu0 0
    %1456 = vmatprep.mubr.bf16.mxu0 0
    %1457 = vmatmul.mubr.bf16.gmra.mxu0 %v1410
    %v1458 = vpop.f32.mrf.mxu0
    %v1459 = vadd.f32 %v1407, %v1458
    %v1460 = vpop.f32.mrf.mxu0
    %v1461 = vadd.f32 %v1407, %v1460
    %v1462 = vpop.f32.mrf.mxu0
    %v1463 = vpop.f32.mrf.mxu0
    %1464 = vdwg.mxu0
    %1465 = vmatprep.subr.bf16.mxu0 0
    %1466 = vmatpush1.bf16.msra.mxu0 0
    %1467 = vmatprep.subr.bf16.mxu0 0
    %1468 = vmatpush1.bf16.msra.mxu0 0
    %1469 = vmatprep.subr.bf16.mxu0 0
    %1470 = vmatpush1.bf16.msra.mxu0 0
    %1471 = vmatprep.subr.bf16.mxu0 %v1422
    %1472 = vmatpush1.bf16.msra.mxu0 %v1419
    %1473 = vmatprep.subr.bf16.mxu0 %v1368
    %1474 = vmatpush1.bf16.msra.mxu0 %v1367
    %1475 = vmatprep.subr.bf16.mxu0 %v1384
    %1476 = vmatpush1.bf16.msra.mxu0 %v1382
    %1477 = vmatprep.subr.bf16.mxu0 %v1403
    %1478 = vmatpush1.bf16.msra.mxu0 %v1399
    %1479 = vmatprep.subr.bf16.mxu0 %v1324
    %1480 = vmatpush1.bf16.msra.mxu0 %v1323
    %1481 = vmatprep.subr.bf16.mxu0 0
    %1482 = vmatpush2.bf16.msra.mxu0 0
    %1483 = vmatprep.subr.bf16.mxu0 0
    %1484 = vmatpush2.bf16.msra.mxu0 0
    %1485 = vmatprep.subr.bf16.mxu0 0
    %1486 = vmatpush2.bf16.msra.mxu0 0
    %1487 = vmatprep.subr.bf16.mxu0 0
    %1488 = vmatpush2.bf16.msra.mxu0 0
    %1489 = vmatprep.subr.bf16.mxu0 0
    %1490 = vmatpush2.bf16.msra.mxu0 0
    %1491 = vmatprep.subr.bf16.mxu0 0
    %1492 = vmatpush2.bf16.msra.mxu0 0
    %1493 = vmatprep.subr.bf16.mxu0 0
    %1494 = vmatpush2.bf16.msra.mxu0 0
    %1495 = vmatprep.subr.bf16.mxu0 0
    %1496 = vmatpush2.bf16.msra.mxu0 0
    %1497 = vmatprep.mubr.bf16.mxu0 0
    %1498 = vmatmul.mubr.bf16.gmra.mxu0 %v1410
    %v1499 = vpop.f32.mrf.mxu0
    %v1500 = vadd.f32 %v1407, %v1499
    %v1501 = vpop.f32.mrf.mxu0
    %v1502 = vadd.f32 %v1407, %v1501
    %v1503 = vpop.f32.mrf.mxu0
    %v1504 = vpop.f32.mrf.mxu0
    %1505 = vdwg.mxu0
    %v1506 = vadd.f32 %v1459, %v1461
    %v1507 = vadd.f32 %v1506, %v1500
    %v1508 = vadd.f32 %v1507, %v1502
    %1509 = vadd.xlane.f32.xlu0 %v1508
    %v1510 = vpop.xlane.xlu0 %1509
    %v1511 = vmul.f32 %v1459, %v1459
    %v1512 = vmul.f32 %v1461, %v1461
    %v1513 = vmul.f32 %v1500, %v1500
    %v1514 = vmul.f32 %v1502, %v1502
    %v1515 = vadd.f32 %v1511, %v1512
    %v1516 = vadd.f32 %v1515, %v1513
    %v1517 = vadd.f32 %v1516, %v1514
    %1518 = vadd.xlane.f32.xlu0 %v1517
    %v1519 = vpop.xlane.xlu0 %1518
    %v1520 = vmul.f32 %v1510, 0.001953125
    %v1521 = vmul.f32 %v1519, 0.001953125
    %v1522 = vmul.f32 %v1520, %v1520
    %v1523 = vsub.f32 %v1521, %v1522
    %v1524 = vsub.f32 %v1459, %v1520
    %v1525 = vsub.f32 %v1461, %v1520
    %v1526 = vsub.f32 %v1500, %v1520
    %v1527 = vsub.f32 %v1502, %v1520
    %v1528 = vadd.f32 %v1523, 1e-05
    %v1529 = vrsqrt.pop %v1528
    %v1530 = vmul.f32 %v1524, %v1529
    %v1531 = vmul.f32 %v1525, %v1529
    %v1532 = vmul.f32 %v1526, %v1529
    %v1533 = vmul.f32 %v1527, %v1529
    %1534 = vset.pattern.permute.xlu0 9
    %1535 = vperm.xlu0 %1534, %v204
    %v1536 = vpop.permute.xlu0 %1535
    %v1538 = vmul.f32 %v1530, %v1536
    %v1539 = vmul.f32 %v1531, %v1536
    %v1540 = vmul.f32 %v1532, %v1536
    %v1541 = vmul.f32 %v1533, %v1536
    %1542 = vset.pattern.permute.xlu0 10
    %1543 = vperm.xlu0 %1542, %v204
    %v1544 = vpop.permute.xlu0 %1543
    %v1546 = vadd.f32 %v1538, %v1544
    %v1547 = vadd.f32 %v1539, %v1544
    %v1548 = vadd.f32 %v1540, %v1544
    %v1549 = vadd.f32 %v1541, %v1544
    %v1550 = vmax.f32 %v1546, 0.0
    %v1551 = vmax.f32 %v1547, 0.0
    %v1552 = vmax.f32 %v1548, 0.0
    %v1553 = vmax.f32 %v1549, 0.0
    %v1554 = vpack.c.bf16 %v1550, %v1550
    %v1555 = vpack.c.bf16 %v1551, %v1551
    %v1556 = vpack.c.bf16 %v1552, %v1552
    %v1557 = vpack.c.bf16 %v1553, %v1553
    %1559 = vrot.lane.b32.xlu0 %v1557, 1
    %v1560 = vpop.permute.xlu0 %1559
    %1564 = vrot.lane.b32.xlu0 %v1554, 1
    %v1565 = vpop.permute.xlu0 %1564
    %1566 = vrot.lane.b32.xlu0 %v1555, 1
    %v1567 = vpop.permute.xlu0 %1566
    %1568 = vrot.lane.b32.xlu0 %v1556, 1
    %v1569 = vpop.permute.xlu0 %1568
    %v1570 = vsel %vm277, %v1565, %v1567
    %v1571 = vsel %vm277, %v1567, %v1569
    %v1572 = vsel %vm277, %v1569, %v1560
    %v1578 = vsel %vm284, %v1560, %v1565
    %1580 = vrot.lane.b32.xlu0 %v1554, 113
    %v1581 = vpop.permute.xlu0 %1580
    %1582 = vrot.lane.b32.xlu0 %v1555, 113
    %v1583 = vpop.permute.xlu0 %1582
    %1584 = vrot.lane.b32.xlu0 %v1556, 113
    %v1585 = vpop.permute.xlu0 %1584
    %1586 = vrot.lane.b32.xlu0 %v1557, 113
    %v1587 = vpop.permute.xlu0 %1586
    %v1588 = vsel %vm297, %v1581, %v1583
    %v1589 = vsel %vm297, %v1583, %v1585
    %v1590 = vsel %vm297, %v1585, %v1587
    %v1596 = vsel %vm304, %v1587, %v1581
    %v1598 = vsel %vm337, %v1588, %v1578
    %v1599 = vsel %vm338, %v1589, %v1570
    %v1600 = vsel %vm339, %v1590, %v1571
    %v1601 = vsel %vm340, %v1596, %v1572
    %1602 = vrot.lane.b32.xlu0 %v1554, 127
    %v1603 = vpop.permute.xlu0 %1602
    %1604 = vrot.lane.b32.xlu0 %v1555, 127
    %v1605 = vpop.permute.xlu0 %1604
    %1606 = vrot.lane.b32.xlu0 %v1556, 127
    %v1607 = vpop.permute.xlu0 %1606
    %1608 = vrot.lane.b32.xlu0 %v1557, 127
    %v1609 = vpop.permute.xlu0 %1608
    %v1610 = vsel %vm353, %v1603, %v1605
    %v1611 = vsel %vm353, %v1605, %v1607
    %v1612 = vsel %vm353, %v1607, %v1609
    %v1618 = vsel %vm360, %v1609, %v1603
    %1620 = vrot.lane.b32.xlu0 %v1557, 15
    %v1621 = vpop.permute.xlu0 %1620
    %1622 = vrot.lane.b32.xlu0 %v1554, 15
    %v1623 = vpop.permute.xlu0 %1622
    %1624 = vrot.lane.b32.xlu0 %v1555, 15
    %v1625 = vpop.permute.xlu0 %1624
    %1626 = vrot.lane.b32.xlu0 %v1556, 15
    %v1627 = vpop.permute.xlu0 %1626
    %v1628 = vsel %vm373, %v1623, %v1625
    %v1629 = vsel %vm373, %v1625, %v1627
    %v1630 = vsel %vm373, %v1627, %v1621
    %v1636 = vsel %vm380, %v1621, %v1623
    %v1638 = vsel %vm413, %v1636, %v1610
    %v1639 = vsel %vm414, %v1628, %v1611
    %v1640 = vsel %vm415, %v1629, %v1612
    %v1641 = vsel %vm416, %v1630, %v1618
    %v1642 = vrot.slane %v1554, 4
    %v1643 = vrot.slane %v1555, 4
    %v1644 = vrot.slane %v1556, 4
    %v1645 = vrot.slane %v1557, 4
    %v1648 = vsel %vm425, %v1598, %v1642
    %v1651 = vsel %vm425, %v1599, %v1643
    %v1654 = vsel %vm425, %v1600, %v1644
    %v1657 = vsel %vm425, %v1601, %v1645
    %1660 = vrot.lane.b32.xlu0 %v1657, 16
    %v1661 = vpop.permute.xlu0 %1660
    %1662 = vrot.lane.b32.xlu0 %v1641, 16
    %v1663 = vpop.permute.xlu0 %1662
    %1670 = vrot.lane.b32.xlu0 %v1648, 16
    %v1671 = vpop.permute.xlu0 %1670
    %1672 = vrot.lane.b32.xlu0 %v1651, 16
    %v1673 = vpop.permute.xlu0 %1672
    %1674 = vrot.lane.b32.xlu0 %v1654, 16
    %v1675 = vpop.permute.xlu0 %1674
    %1676 = vrot.lane.b32.xlu0 %v1638, 16
    %v1677 = vpop.permute.xlu0 %1676
    %1678 = vrot.lane.b32.xlu0 %v1639, 16
    %v1679 = vpop.permute.xlu0 %1678
    %1680 = vrot.lane.b32.xlu0 %v1640, 16
    %v1681 = vpop.permute.xlu0 %1680
    %v1682 = vsel %vm462, %v1671, %v1673
    %v1683 = vsel %vm462, %v1673, %v1675
    %v1684 = vsel %vm462, %v1675, %v1661
    %v1685 = vsel %vm462, %v1677, %v1679
    %v1686 = vsel %vm462, %v1679, %v1681
    %v1687 = vsel %vm462, %v1681, %v1663
    %v1696 = vsel %vm475, %v1661, %v1671
    %v1700 = vsel %vm475, %v1663, %v1677
    %v1702 = vsel %vm512, %v1683, %v1696
    %v1703 = vsel %vm513, %v1684, %v1682
    %v1704 = vsel %vm514, %v1696, %v1683
    %v1705 = vsel %vm515, %v1682, %v1684
    %v1706 = vsel %vm512, %v1686, %v1700
    %v1707 = vsel %vm513, %v1687, %v1685
    %v1708 = vsel %vm514, %v1700, %v1686
    %v1709 = vsel %vm515, %v1685, %v1687
    %1710 = vrot.lane.b32.xlu0 %v1648, 112
    %v1711 = vpop.permute.xlu0 %1710
    %1712 = vrot.lane.b32.xlu0 %v1651, 112
    %v1713 = vpop.permute.xlu0 %1712
    %1714 = vrot.lane.b32.xlu0 %v1654, 112
    %v1715 = vpop.permute.xlu0 %1714
    %1716 = vrot.lane.b32.xlu0 %v1657, 112
    %v1717 = vpop.permute.xlu0 %1716
    %1718 = vrot.lane.b32.xlu0 %v1638, 112
    %v1719 = vpop.permute.xlu0 %1718
    %1720 = vrot.lane.b32.xlu0 %v1639, 112
    %v1721 = vpop.permute.xlu0 %1720
    %1722 = vrot.lane.b32.xlu0 %v1640, 112
    %v1723 = vpop.permute.xlu0 %1722
    %1724 = vrot.lane.b32.xlu0 %v1641, 112
    %v1725 = vpop.permute.xlu0 %1724
    %v1726 = vsel %vm540, %v1711, %v1713
    %v1727 = vsel %vm540, %v1713, %v1715
    %v1728 = vsel %vm540, %v1715, %v1717
    %v1729 = vsel %vm540, %v1719, %v1721
    %v1730 = vsel %vm540, %v1721, %v1723
    %v1731 = vsel %vm540, %v1723, %v1725
    %v1740 = vsel %vm553, %v1717, %v1711
    %v1744 = vsel %vm553, %v1725, %v1719
    %v1746 = vsel %vm590, %v1728, %v1726
    %v1747 = vsel %vm591, %v1740, %v1727
    %v1748 = vsel %vm592, %v1726, %v1728
    %v1749 = vsel %vm593, %v1727, %v1740
    %v1750 = vsel %vm590, %v1731, %v1729
    %v1751 = vsel %vm591, %v1744, %v1730
    %v1752 = vsel %vm592, %v1729, %v1731
    %v1753 = vsel %vm593, %v1730, %v1744
    %v1754 = vrot.slane %v1648, 4
    %v1755 = vrot.slane %v1651, 4
    %v1756 = vrot.slane %v1654, 4
    %v1757 = vrot.slane %v1657, 4
    %v1758 = vrot.slane %v1638, 4
    %v1759 = vsel %vm602, %v1754, %v1758
    %v1760 = vrot.slane %v1639, 4
    %v1761 = vsel %vm602, %v1755, %v1760
    %v1762 = vrot.slane %v1640, 4
    %v1763 = vsel %vm602, %v1756, %v1762
    %v1764 = vrot.slane %v1641, 4
    %v1765 = vsel %vm602, %v1757, %v1764
    %v1772 = vsel %vm425, %v1706, %v1754
    %v1776 = vsel %vm425, %v1707, %v1755
    %v1780 = vsel %vm425, %v1708, %v1756
    %v1784 = vsel %vm425, %v1709, %v1757
    %v1786 = vpack.c.bf16 %v1118, %v1118
    %v1787 = vpack.c.bf16 %v1119, %v1119
    %v1788 = vpack.c.bf16 %v1120, %v1120
    %v1789 = vpack.c.bf16 %v1121, %v1121
    %v1794 = vrot.slane %v1786, 4
    %v1795 = vrot.slane %v1787, 4
    %v1796 = vrot.slane %v1788, 4
    %v1797 = vrot.slane %v1789, 4
    %v1800 = vsel %vm425, %v1750, %v1794
    %v1804 = vsel %vm425, %v1751, %v1795
    %v1808 = vsel %vm425, %v1752, %v1796
    %v1812 = vsel %vm425, %v1753, %v1797
    %1814 = vset.pattern.permute.xlu0 11
    %1815 = vperm.xlu0 %1814, %v204
    %v1816 = vpop.permute.xlu0 %1815
    %1819 = vset.pattern.permute.xlu0 11
    %1820 = vperm.xlu0 %1819, %v205
    %v1821 = vpop.permute.xlu0 %1820
    %v1825 = vunpack.c.l.b16 %v1123
    %v1826 = vunpack.c.l.b16 %v1124
    %v1827 = vpack.c.b16 %v1826, %v1825
    %vm1828 = vcmask 654336
    %v1830 = vsel %vm1828, %v1827, 0
    %1832 = vmatprep.subr.bf16.mxu0 0
    %1833 = vmatpush1.bf16.msra.mxu0 0
    %1834 = vmatprep.subr.bf16.mxu0 0
    %1835 = vmatpush1.bf16.msra.mxu0 0
    %1836 = vmatprep.subr.bf16.mxu0 0
    %1837 = vmatpush1.bf16.msra.mxu0 0
    %1838 = vmatprep.subr.bf16.mxu0 %v1804
    %1839 = vmatpush1.bf16.msra.mxu0 %v1800
    %1840 = vmatprep.subr.bf16.mxu0 %v1747
    %1841 = vmatpush1.bf16.msra.mxu0 %v1746
    %1842 = vmatprep.subr.bf16.mxu0 %v1761
    %1843 = vmatpush1.bf16.msra.mxu0 %v1759
    %1844 = vmatprep.subr.bf16.mxu0 %v1776
    %1845 = vmatpush1.bf16.msra.mxu0 %v1772
    %1846 = vmatprep.subr.bf16.mxu0 %v1703
    %1847 = vmatpush1.bf16.msra.mxu0 %v1702
    %1848 = vmatprep.subr.bf16.mxu0 0
    %1849 = vmatpush2.bf16.msra.mxu0 0
    %1850 = vmatprep.subr.bf16.mxu0 0
    %1851 = vmatpush2.bf16.msra.mxu0 0
    %1852 = vmatprep.subr.bf16.mxu0 0
    %1853 = vmatpush2.bf16.msra.mxu0 0
    %1854 = vmatprep.subr.bf16.mxu0 0
    %1855 = vmatpush2.bf16.msra.mxu0 0
    %1856 = vmatprep.subr.bf16.mxu0 0
    %1857 = vmatpush2.bf16.msra.mxu0 0
    %1858 = vmatprep.subr.bf16.mxu0 0
    %1859 = vmatpush2.bf16.msra.mxu0 0
    %1860 = vmatprep.subr.bf16.mxu0 0
    %1861 = vmatpush2.bf16.msra.mxu0 0
    %1862 = vmatprep.subr.bf16.mxu0 0
    %1863 = vmatpush2.bf16.msra.mxu0 0
    %1864 = vmatprep.mubr.bf16.mxu0 0
    %1865 = vmatmul.mubr.bf16.gmra.mxu0 %v1830
    %v1866 = vpop.f32.mrf.mxu0
    %v1867 = vadd.f32 %v1816, %v1866
    %v1868 = vpop.f32.mrf.mxu0
    %v1869 = vadd.f32 %v1816, %v1868
    %v1870 = vpop.f32.mrf.mxu0
    %v1871 = vadd.f32 %v1821, %v1870
    %v1872 = vpop.f32.mrf.mxu0
    %v1873 = vadd.f32 %v1821, %v1872
    %1874 = vdwg.mxu0
    %1875 = vmatprep.subr.bf16.mxu0 0
    %1876 = vmatpush1.bf16.msra.mxu0 0
    %1877 = vmatprep.subr.bf16.mxu0 0
    %1878 = vmatpush1.bf16.msra.mxu0 0
    %1879 = vmatprep.subr.bf16.mxu0 0
    %1880 = vmatpush1.bf16.msra.mxu0 0
    %1881 = vmatprep.subr.bf16.mxu0 %v1812
    %1882 = vmatpush1.bf16.msra.mxu0 %v1808
    %1883 = vmatprep.subr.bf16.mxu0 %v1749
    %1884 = vmatpush1.bf16.msra.mxu0 %v1748
    %1885 = vmatprep.subr.bf16.mxu0 %v1765
    %1886 = vmatpush1.bf16.msra.mxu0 %v1763
    %1887 = vmatprep.subr.bf16.mxu0 %v1784
    %1888 = vmatpush1.bf16.msra.mxu0 %v1780
    %1889 = vmatprep.subr.bf16.mxu0 %v1705
    %1890 = vmatpush1.bf16.msra.mxu0 %v1704
    %1891 = vmatprep.subr.bf16.mxu0 0
    %1892 = vmatpush2.bf16.msra.mxu0 0
    %1893 = vmatprep.subr.bf16.mxu0 0
    %1894 = vmatpush2.bf16.msra.mxu0 0
    %1895 = vmatprep.subr.bf16.mxu0 0
    %1896 = vmatpush2.bf16.msra.mxu0 0
    %1897 = vmatprep.subr.bf16.mxu0 0
    %1898 = vmatpush2.bf16.msra.mxu0 0
    %1899 = vmatprep.subr.bf16.mxu0 0
    %1900 = vmatpush2.bf16.msra.mxu0 0
    %1901 = vmatprep.subr.bf16.mxu0 0
    %1902 = vmatpush2.bf16.msra.mxu0 0
    %1903 = vmatprep.subr.bf16.mxu0 0
    %1904 = vmatpush2.bf16.msra.mxu0 0
    %1905 = vmatprep.subr.bf16.mxu0 0
    %1906 = vmatpush2.bf16.msra.mxu0 0
    %1907 = vmatprep.mubr.bf16.mxu0 0
    %1908 = vmatmul.mubr.bf16.gmra.mxu0 %v1830
    %v1909 = vpop.f32.mrf.mxu0
    %v1910 = vadd.f32 %v1816, %v1909
    %v1911 = vpop.f32.mrf.mxu0
    %v1912 = vadd.f32 %v1816, %v1911
    %v1913 = vpop.f32.mrf.mxu0
    %v1914 = vadd.f32 %v1821, %v1913
    %v1915 = vpop.f32.mrf.mxu0
    %v1916 = vadd.f32 %v1821, %v1915
    %1917 = vdwg.mxu0
    %1918 = vst [vmem:[#allocation11] sm:$0xff] %v1867
    %1919 = vst [vmem:[#allocation11 + $0x8] sm:$0xff] %v1869
    %1920 = vst [vmem:[#allocation11 + $0x10] sm:$0xff] %v1910
    %1921 = vst [vmem:[#allocation11 + $0x18] sm:$0xff] %v1912
    %1922 = vst [vmem:[#allocation11 + $0x20] sm:$0xff] %v1871
    %1923 = vst [vmem:[#allocation11 + $0x28] sm:$0xff] %v1873
    %1924 = vst [vmem:[#allocation11 + $0x30] sm:$0xff] %v1914
    %1925 = vst [vmem:[#allocation11 + $0x38] sm:$0xff] %v1916
    // Predicated region
    $region46: #{tpu_custom_call.1} parent=1 // pred_check
      _
    $region47: #{tpu_custom_call.1} parent=1 // pred_check_branch
      %1927 = sbr.rel (0) target = $region49
    $region48: #{tpu_custom_call.1} parent=1 // pred_region
      %s1929 = ssub.s32 1024, 1024
      %1930 = vsyncadd [#allocation4], %s1929
      %s1931 = sshll.u32 [#allocation11], 4
      %s1932 = int_to_ptr.vmem [resolvable:$true] %s1931
      %1937 = dma.vmem_to_hbm [thread:$0]  %s1932, 1024, %s6, [#allocation4], 512, 512, 32
    $region49: #{tpu_custom_call.1} parent=1 // pred_fallthru
      _
    // Predicated region
    $region50: #{tpu_custom_call.1} parent=1 // pred_check
      _
    $region51: #{tpu_custom_call.1} parent=1 // pred_check_branch
      %1939 = sbr.rel (0) target = $region53
    $region52: #{tpu_custom_call.1} parent=1 // pred_region
      %1940 = dma.done [#allocation4], 1024
    $region53: #{tpu_custom_call.1} parent=1 // pred_fallthru
      _
    %1941 = vsyncpa [#allocation3], 1
    %1942 = vsyncpa [#allocation6], 1
    %1943 = vsyncpa [#allocation9], 1
    %1944 = vsyncpa [#allocation4], 1

</llo_original>
